<compile_context>
chip_gen: v5e
topology: v5e:2x2
jax: 0.10.0
libtpu: 0.0.40
codegen_flags: <defaults>
</compile_context>

<pallas_src>
import functools

import jax
import jax.numpy as jnp
from jax.experimental import pallas as pl
from jax.experimental.pallas import tpu as pltpu


def _focal_loss_kernel(logits_ref, target_ref, out_ref, *, n_valid, tile_n,
                       tiles_per_chunk):
    p = pl.program_id(0)          # parallel chunk (megacore split on v7x)
    i = pl.program_id(1)          # reduction step within the chunk

    @pl.when(i == 0)
    def _init():
        out_ref[...] = jnp.zeros_like(out_ref)

    logits = logits_ref[...].astype(jnp.float32)            # (TILE_N, C)
    tgt = target_ref[...]                                    # (TILE_N, 1) int32
    tn, c = logits.shape

    # Numerically stable log-softmax; target logit gathered from `shifted`
    # so row_max cancels out of the per-row NLL:
    #   nll = log(sum(exp(x - max))) - (x_t - max)
    row_max = jnp.max(logits, axis=-1, keepdims=True)
    shifted = logits - row_max
    lse = jnp.log(jnp.sum(jnp.exp(shifted), axis=-1, keepdims=True))   # (TILE_N,1)

    class_ids = jax.lax.broadcasted_iota(jnp.int32, (tn, c), dimension=1)
    tgt_shifted = jnp.sum(
        jnp.where(class_ids == tgt, shifted, 0.0), axis=-1, keepdims=True)

    nll = lse - tgt_shifted                                             # (TILE_N,1)

    # Mask padded rows of the last (partial) tile so they contribute 0.
    tile_idx = p * tiles_per_chunk + i
    row_ids = jax.lax.broadcasted_iota(jnp.int32, (tn, 1), 0) + tile_idx * tile_n
    tile_sum = jnp.sum(jnp.where(row_ids < n_valid, nll, 0.0))

    # Accumulate into the (8,1) resident block (broadcast over sublanes).
    out_ref[...] += tile_sum


def _pick_tile_n(n, c, itemsize):
    # ~4 MiB per logits tile (x2 double-buffering) keeps all generations,
    # including v7x's smaller VMEM, comfortably inside the scoped limit while
    # staying large enough (>=512 rows for typical C) to hit HBM roofline.
    budget = 4 << 20
    t = max(budget // max(c * itemsize, 1), 16)
    t = min(int(t), 2048)
    t -= t % 16                      # sublane multiple (bf16 needs 16)
    if n <= t:
        t = ((n + 15) // 16) * 16    # single tile covering everything
    return max(t, 16)


def focal_loss(output, target, *, tile_n=None):
    """loss = 0.5 * mean cross-entropy.

    output: (N, C) or (B, C, H, W) logits (any float dtype, no pre-cast needed).
    target: (N,)   or (B, H, W)   integer class ids in [0, C).
    Returns a scalar float32.
    """
    if output.ndim == 4:
        b, c, h, w = output.shape
        logits = jnp.transpose(output, (0, 2, 3, 1)).reshape(b * h * w, c)
        tgt = target.reshape(b * h * w)
    elif output.ndim == 2:
        logits, tgt = output, target
    else:
        raise ValueError(f"unsupported logits rank {output.ndim}")
    # TODO(synk): no ignore_index handling — targets must lie in [0, C).

    n, c = logits.shape
    tgt2d = tgt.astype(jnp.int32).reshape(n, 1)

    itemsize = jnp.dtype(logits.dtype).itemsize
    if tile_n is None:
        tile_n = _pick_tile_n(n, c, itemsize)
    n_tiles = pl.cdiv(n, tile_n)

    # Split the reduction across 2 TensorCores (v7x megacore) when the tile
    # count divides evenly; otherwise one chunk (no clamping / OOB blocks).
    n_chunks = 2 if (n_tiles % 2 == 0 and n_tiles >= 2) else 1
    tiles_per_chunk = n_tiles // n_chunks

    tile_bytes = tile_n * (c * itemsize + 4)
    vmem_limit = int(min(max(4 * tile_bytes + (2 << 20), 16 << 20), 48 << 20))

    kernel = functools.partial(
        _focal_loss_kernel, n_valid=n, tile_n=tile_n,
        tiles_per_chunk=tiles_per_chunk)

    partials = pl.pallas_call(
        kernel,
        out_shape=jax.ShapeDtypeStruct((8 * n_chunks, 1), jnp.float32),
        grid=(n_chunks, tiles_per_chunk),
        in_specs=[
            pl.BlockSpec((tile_n, c),
                         lambda p, i, t=tiles_per_chunk: (p * t + i, 0)),
            pl.BlockSpec((tile_n, 1),
                         lambda p, i, t=tiles_per_chunk: (p * t + i, 0)),
        ],
        out_specs=pl.BlockSpec((8, 1), lambda p, i: (p, 0)),
        compiler_params=pltpu.CompilerParams(
            dimension_semantics=("parallel", "arbitrary"),
            vmem_limit_bytes=vmem_limit),
        cost_estimate=pl.CostEstimate(
            flops=5 * n * c,
            transcendentals=n * c + n,
            bytes_accessed=n * c * itemsize + n * 4 + 8 * n_chunks * 4),
    )(logits, tgt2d)

    # Every sublane of a chunk's (8,1) block holds the same chunk total.
    chunk_totals = partials.reshape(n_chunks, 8)[:, 0]
    return 0.5 * jnp.sum(chunk_totals) / n


def focal_loss_ref(logits, target):
    """Pure-JAX reference: 0.5 * mean cross-entropy over (N, C) logits."""
    logits = logits.astype(jnp.float32)
    logz = jax.nn.logsumexp(logits, axis=-1)
    tgt_logit = jnp.take_along_axis(
        logits, target.astype(jnp.int32)[:, None], axis=-1)[:, 0]
    return 0.5 * jnp.mean(logz - tgt_logit)


if __name__ == "__main__":
    key = jax.random.PRNGKey(0)
    k1, k2, k3, k4 = jax.random.split(key, 4)

    # 1) segmentation-style NCHW input: B=2, C=4, H=W=16
    B, C, H, W = 2, 4, 16, 16
    output = jax.random.normal(k1, (B, C, H, W), dtype=jnp.float32)
    target = jax.random.randint(k2, (B, H, W), 0, C, dtype=jnp.int32)

    loss = focal_loss(output, target)
    jax.block_until_ready(loss)

    logits_flat = jnp.transpose(output, (0, 2, 3, 1)).reshape(B * H * W, C)
    ref = focal_loss_ref(logits_flat, target.reshape(-1))
    assert jnp.allclose(loss, ref, rtol=1e-5, atol=1e-5), (loss, ref)

    # 2) multi-tile grid with a ragged last tile (masking path), f32
    N2, C2 = 300, 37
    logits2 = jax.random.normal(k3, (N2, C2), dtype=jnp.float32)
    target2 = jax.random.randint(k4, (N2,), 0, C2, dtype=jnp.int32)
    loss2 = focal_loss(logits2, target2, tile_n=128)   # 3 tiles, last partial
    jax.block_until_ready(loss2)
    ref2 = focal_loss_ref(logits2, target2)
    assert jnp.allclose(loss2, ref2, rtol=1e-5, atol=1e-5), (loss2, ref2)

    # 3) bf16 input (native dtype, no wrapper cast) + even tile count
    #    -> exercises the 2-chunk megacore split and in-kernel masking.
    N3, C3 = 1000, 24
    logits3 = jax.random.normal(k1, (N3, C3), dtype=jnp.float32).astype(jnp.bfloat16)
    target3 = jax.random.randint(k2, (N3,), 0, C3, dtype=jnp.int32)
    loss3 = focal_loss(logits3, target3, tile_n=128)   # 8 tiles -> 2 chunks
    jax.block_until_ready(loss3)
    ref3 = focal_loss_ref(logits3, target3)
    assert jnp.allclose(loss3, ref3, rtol=1e-4, atol=1e-4), (loss3, ref3)

    print("KERNEL_OK")
</pallas_src>

<mosaic_0001>
module attributes {stable_mosaic.version = 11 : i64} {
  func.func @_focal_loss_kernel(%arg0: i32, %arg1: i32, %arg2: memref<512x4xf32, #tpu.memory_space<vmem>>, %arg3: memref<512x1xi32, #tpu.memory_space<vmem>>, %arg4: memref<8x1xf32, #tpu.memory_space<vmem>>) attributes {dimension_semantics = [#tpu.dimension_semantics<parallel>, #tpu.dimension_semantics<arbitrary>], iteration_bounds = array<i64: 1, 1>, scalar_prefetch = 0 : i64, scratch_operands = 0 : i64, tpu.core_type = #tpu.core_type<tc>, window_params = [{transform_indices = @transform_0, window_bounds = array<i64: 512, 4>}, {transform_indices = @transform_1, window_bounds = array<i64: 512, 1>}, {transform_indices = @transform_2, window_bounds = array<i64: 8, 1>}]} {
    %c0_i32 = arith.constant 0 : i32
    %0 = arith.cmpi eq, %arg1, %c0_i32 : i32
    %1 = arith.extui %0 : i1 to i32
    %c0_i32_0 = arith.constant 0 : i32
    %2 = arith.cmpi ne, %1, %c0_i32_0 : i32
    scf.if %2 {
      %cst_14 = arith.constant 0.000000e+00 : f32
      %39 = vector.broadcast %cst_14 : f32 to vector<8x1xf32>
      %c0_15 = arith.constant 0 : index
      %c0_16 = arith.constant 0 : index
      %40 = vector.load %arg4[%c0_15, %c0_16] : memref<8x1xf32, #tpu.memory_space<vmem>>, vector<8x1xf32>
      tpu.vector_store %arg4[%c0_15, %c0_16], %39 {strides = array<i32>} : memref<8x1xf32, #tpu.memory_space<vmem>>, vector<8x1xf32>,
    } else {
    }
    %c0 = arith.constant 0 : index
    %c0_1 = arith.constant 0 : index
    %3 = vector.load %arg2[%c0, %c0_1] : memref<512x4xf32, #tpu.memory_space<vmem>>, vector<512x4xf32>
    %c0_2 = arith.constant 0 : index
    %c0_3 = arith.constant 0 : index
    %4 = vector.load %arg3[%c0_2, %c0_3] : memref<512x1xi32, #tpu.memory_space<vmem>>, vector<512x1xi32>
    %cst = arith.constant dense<0xFF800000> : vector<512xf32>
    %5 = vector.multi_reduction <maximumf>, %3, %cst [1] : vector<512x4xf32> to vector<512xf32>
    %6 = vector.shape_cast %5 : vector<512xf32> to vector<512x1xf32>
    %7 = vector.broadcast %6 : vector<512x1xf32> to vector<512x4xf32>
    %8 = arith.subf %3, %7 : vector<512x4xf32>
    %9 = math.exp %8 : vector<512x4xf32>
    %cst_4 = arith.constant dense<0.000000e+00> : vector<512xf32>
    %10 = vector.multi_reduction <add>, %9, %cst_4 [1] : vector<512x4xf32> to vector<512xf32>
    %11 = vector.shape_cast %10 : vector<512xf32> to vector<512x1xf32>
    %12 = math.log %11 : vector<512x1xf32>
    %13 = tpu.iota {dimensions = array<i32: 1>} : vector<512x4xi32>
    %14 = vector.broadcast %4 : vector<512x1xi32> to vector<512x4xi32>
    %15 = arith.cmpi eq, %13, %14 : vector<512x4xi32>
    %cst_5 = arith.constant 0.000000e+00 : f32
    %16 = vector.broadcast %cst_5 : f32 to vector<512x4xf32>
    %17 = arith.select %15, %8, %16 : vector<512x4xi1>, vector<512x4xf32>
    %cst_6 = arith.constant dense<0.000000e+00> : vector<512xf32>
    %18 = vector.multi_reduction <add>, %17, %cst_6 [1] : vector<512x4xf32> to vector<512xf32>
    %19 = vector.shape_cast %18 : vector<512xf32> to vector<512x1xf32>
    %20 = arith.subf %12, %19 : vector<512x1xf32>
    %c1_i32 = arith.constant 1 : i32
    %21 = arith.muli %arg0, %c1_i32 : i32
    %22 = arith.addi %21, %arg1 : i32
    %23 = tpu.iota {dimensions = array<i32: 0>} : vector<512x1xi32>
    %c512_i32 = arith.constant 512 : i32
    %24 = arith.muli %22, %c512_i32 : i32
    %25 = vector.broadcast %24 : i32 to vector<512x1xi32>
    %26 = arith.addi %23, %25 : vector<512x1xi32>
    %c512_i32_7 = arith.constant 512 : i32
    %27 = vector.broadcast %c512_i32_7 : i32 to vector<512x1xi32>
    %28 = arith.cmpi slt, %26, %27 : vector<512x1xi32>
    %cst_8 = arith.constant 0.000000e+00 : f32
    %29 = vector.broadcast %cst_8 : f32 to vector<512x1xf32>
    %30 = arith.select %28, %20, %29 : vector<512x1xi1>, vector<512x1xf32>
    %31 = vector.shape_cast %30 : vector<512x1xf32> to vector<1x512x1xf32>
    %cst_9 = arith.constant dense<0.000000e+00> : vector<1xf32>
    %32 = vector.multi_reduction <add>, %31, %cst_9 [1, 2] : vector<1x512x1xf32> to vector<1xf32>
    %33 = vector.shape_cast %32 : vector<1xf32> to vector<1x1x1xf32>
    %34 = vector.extract %33[0, 0, 0] : f32 from vector<1x1x1xf32>
    %c0_10 = arith.constant 0 : index
    %c0_11 = arith.constant 0 : index
    %35 = vector.load %arg4[%c0_10, %c0_11] : memref<8x1xf32, #tpu.memory_space<vmem>>, vector<8x1xf32>
    %36 = vector.broadcast %34 : f32 to vector<8x1xf32>
    %37 = arith.addf %35, %36 : vector<8x1xf32>
    %c0_12 = arith.constant 0 : index
    %c0_13 = arith.constant 0 : index
    %38 = vector.load %arg4[%c0_12, %c0_13] : memref<8x1xf32, #tpu.memory_space<vmem>>, vector<8x1xf32>
    tpu.vector_store %arg4[%c0_12, %c0_13], %37 {strides = array<i32>} : memref<8x1xf32, #tpu.memory_space<vmem>>, vector<8x1xf32>,
    return
  }
  func.func @transform_0(%arg0: i32, %arg1: i32) -> (i32, i32) {
    %c1_i32 = arith.constant 1 : i32
    %0 = arith.muli %arg0, %c1_i32 : i32
    %1 = arith.addi %0, %arg1 : i32
    %c0_i32 = arith.constant 0 : i32
    %c0_i32_0 = arith.constant 0 : i32
    return %1, %c0_i32 : i32, i32
  }
  func.func @transform_1(%arg0: i32, %arg1: i32) -> (i32, i32) {
    %c1_i32 = arith.constant 1 : i32
    %0 = arith.muli %arg0, %c1_i32 : i32
    %1 = arith.addi %0, %arg1 : i32
    %c0_i32 = arith.constant 0 : i32
    %c0_i32_0 = arith.constant 0 : i32
    return %1, %c0_i32 : i32, i32
  }
  func.func @transform_2(%arg0: i32, %arg1: i32) -> (i32, i32) {
    %c0_i32 = arith.constant 0 : i32
    %c0_i32_0 = arith.constant 0 : i32
    return %arg0, %c0_i32 : i32, i32
  }
}

</mosaic_0001>

<llo_original>
// kernel: tpu_custom_call.1
$region0: #{tpu_custom_call.1}
  #allocation0 [shape = 'u32[]', space=smem, size = 0x4, offset = 0x4, fixed_abs, tag = 'smem constant byte address 0x4 - core index']
  #allocation1 [shape = 'u32[72,128]{1,0:T(1,128)}', space=vmem, size = 0x9000, scoped, tag = 'internal scratch']
  %s0 = inlined_call_operand.vmem [shape: f32[512,4], index: 0, kind: input, shape index: {}]
  %s1 = inlined_call_operand.vmem [shape: s32[512,1], index: 1, kind: input, shape index: {}]
  %s2 = inlined_call_operand.vmem [shape: f32[8,1], index: 2, kind: output, shape index: {}]
  %s3 = sld [smem:[#allocation0]]
  $region22: #{tpu_custom_call.1} parent=0
    _
  %s5 = ssub.s32 1, %s3
  %s6 = scalar_select 0, %s5, %s3
  // Predicated region
  $region2: #{tpu_custom_call.1} parent=0 // pred_check
    _
  $region3: #{tpu_custom_call.1} parent=0 // pred_check_branch
    %8 = sbr.rel (0) target = $region5
  $region4: #{tpu_custom_call.1} parent=0 // pred_region
    %s9 = sadd.s32 0, 0
    %s10 = smul.u32 64, %s9
    %p11 = scmp.lt.s32.totalorder %s10, 63
    %s12 = scalar_select %p11, %s10, 63
    %s13 = smul.addr %s12, 8
    %s14 = scalar_lea.vmem %s0, %s13
    %s15 = sadd.s32 0, 0
    %s16 = smul.u32 64, %s15
  $region5: #{tpu_custom_call.1} parent=0 // pred_fallthru
    _
  // Predicated region
  $region6: #{tpu_custom_call.1} parent=0 // pred_check
    _
  $region7: #{tpu_custom_call.1} parent=0 // pred_check_branch
    %18 = sbr.rel (0) target = $region9
  $region8: #{tpu_custom_call.1} parent=0 // pred_region
    %s19 = sadd.s32 0, 0
    %s20 = smul.u32 64, %s19
    %p21 = scmp.lt.s32.totalorder %s20, 63
    %s22 = scalar_select %p21, %s20, 63
    %s23 = smul.addr %s22, 8
    %s24 = scalar_lea.vmem %s1, %s23
    %s25 = sadd.s32 0, 0
    %s26 = smul.u32 64, %s25
  $region9: #{tpu_custom_call.1} parent=0 // pred_fallthru
    _
  %s27 = sadd.s32 0, 0
  %s28 = smul.u32 64, %s27
  %p29 = scmp.lt.s32.totalorder %s28, 63
  %s30 = scalar_select %p29, %s28, 63
  %s31 = smul.addr %s30, 8
  %s32 = scalar_lea.vmem %s0, %s31
  %s33 = sadd.s32 0, 0
  %s34 = smul.u32 64, %s33
  %p35 = scmp.lt.s32.totalorder %s34, 63
  %s36 = scalar_select %p35, %s34, 63
  %s37 = smul.addr %s36, 8
  %s38 = scalar_lea.vmem %s1, %s37
  %s39 = sadd.s32 0, 0
  %s40 = smul.u32 64, %s39
  %p41 = scmp.lt.s32.totalorder %s40, 63
  %s42 = scalar_select %p41, %s40, 63
  %s43 = smul.addr %s42, 8
  %s44 = scalar_lea.vmem %s0, %s43
  %s45 = sadd.s32 0, 0
  %s46 = smul.u32 64, %s45
  %s47 = sadd.s32 0, 0
  %s48 = smul.u32 64, %s47
  %p49 = scmp.lt.s32.totalorder %s48, 63
  %s50 = scalar_select %p49, %s48, 63
  %s51 = smul.addr %s50, 8
  %s52 = scalar_lea.vmem %s1, %s51
  %s53 = sadd.s32 0, 0
  %s54 = smul.u32 64, %s53
  %p55 = scmp.eq.s32.totalorder 0, 0
  // Predicated region
  $region10: #{tpu_custom_call.1} parent=0 // pred_check
    %p56 = pneg %p55
  $region11: #{tpu_custom_call.1} parent=0 // pred_check_branch
    %58 = sbr.rel (%p56) target = $region13
  $region12: #{tpu_custom_call.1} parent=0 // pred_region
    %vm59 = vcmask 7168
    %60 = vst.msk [vmem:[%s2] sm:$0xff] %vm59, 0.0
  $region13: #{tpu_custom_call.1} parent=0 // pred_fallthru
    _
  %v61 = vld [vmem:[%s44] sm:$0xff]
  %v62 = vld [vmem:[%s44 + $0x8] sm:$0xff]
  %v63 = vld [vmem:[%s44 + $0x10] sm:$0xff]
  %v64 = vld [vmem:[%s44 + $0x18] sm:$0xff]
  %v65 = vld [vmem:[%s44 + $0x20] sm:$0xff]
  %v66 = vld [vmem:[%s44 + $0x28] sm:$0xff]
  %v67 = vld [vmem:[%s44 + $0x30] sm:$0xff]
  %v68 = vld [vmem:[%s44 + $0x38] sm:$0xff]
  %v69 = vld [vmem:[%s44 + $0x40] sm:$0xff]
  %v70 = vld [vmem:[%s44 + $0x48] sm:$0xff]
  %v71 = vld [vmem:[%s44 + $0x50] sm:$0xff]
  %v72 = vld [vmem:[%s44 + $0x58] sm:$0xff]
  %v73 = vld [vmem:[%s44 + $0x60] sm:$0xff]
  %v74 = vld [vmem:[%s44 + $0x68] sm:$0xff]
  %v75 = vld [vmem:[%s44 + $0x70] sm:$0xff]
  %v76 = vld [vmem:[%s44 + $0x78] sm:$0xff]
  %v77 = vld [vmem:[%s44 + $0x80] sm:$0xff]
  %v78 = vld [vmem:[%s44 + $0x88] sm:$0xff]
  %v79 = vld [vmem:[%s44 + $0x90] sm:$0xff]
  %v80 = vld [vmem:[%s44 + $0x98] sm:$0xff]
  %v81 = vld [vmem:[%s44 + $0xa0] sm:$0xff]
  %v82 = vld [vmem:[%s44 + $0xa8] sm:$0xff]
  %v83 = vld [vmem:[%s44 + $0xb0] sm:$0xff]
  %v84 = vld [vmem:[%s44 + $0xb8] sm:$0xff]
  %v85 = vld [vmem:[%s44 + $0xc0] sm:$0xff]
  %v86 = vld [vmem:[%s44 + $0xc8] sm:$0xff]
  %v87 = vld [vmem:[%s44 + $0xd0] sm:$0xff]
  %v88 = vld [vmem:[%s44 + $0xd8] sm:$0xff]
  %v89 = vld [vmem:[%s44 + $0xe0] sm:$0xff]
  %v90 = vld [vmem:[%s44 + $0xe8] sm:$0xff]
  %v91 = vld [vmem:[%s44 + $0xf0] sm:$0xff]
  %v92 = vld [vmem:[%s44 + $0xf8] sm:$0xff]
  %v93 = vld [vmem:[%s44 + $0x100] sm:$0xff]
  %v94 = vld [vmem:[%s44 + $0x108] sm:$0xff]
  %v95 = vld [vmem:[%s44 + $0x110] sm:$0xff]
  %v96 = vld [vmem:[%s44 + $0x118] sm:$0xff]
  %v97 = vld [vmem:[%s44 + $0x120] sm:$0xff]
  %v98 = vld [vmem:[%s44 + $0x128] sm:$0xff]
  %v99 = vld [vmem:[%s44 + $0x130] sm:$0xff]
  %v100 = vld [vmem:[%s44 + $0x138] sm:$0xff]
  %v101 = vld [vmem:[%s44 + $0x140] sm:$0xff]
  %v102 = vld [vmem:[%s44 + $0x148] sm:$0xff]
  %v103 = vld [vmem:[%s44 + $0x150] sm:$0xff]
  %v104 = vld [vmem:[%s44 + $0x158] sm:$0xff]
  %v105 = vld [vmem:[%s44 + $0x160] sm:$0xff]
  %v106 = vld [vmem:[%s44 + $0x168] sm:$0xff]
  %v107 = vld [vmem:[%s44 + $0x170] sm:$0xff]
  %v108 = vld [vmem:[%s44 + $0x178] sm:$0xff]
  %v109 = vld [vmem:[%s44 + $0x180] sm:$0xff]
  %v110 = vld [vmem:[%s44 + $0x188] sm:$0xff]
  %v111 = vld [vmem:[%s44 + $0x190] sm:$0xff]
  %v112 = vld [vmem:[%s44 + $0x198] sm:$0xff]
  %v113 = vld [vmem:[%s44 + $0x1a0] sm:$0xff]
  %v114 = vld [vmem:[%s44 + $0x1a8] sm:$0xff]
  %v115 = vld [vmem:[%s44 + $0x1b0] sm:$0xff]
  %v116 = vld [vmem:[%s44 + $0x1b8] sm:$0xff]
  %v117 = vld [vmem:[%s44 + $0x1c0] sm:$0xff]
  %v118 = vld [vmem:[%s44 + $0x1c8] sm:$0xff]
  %v119 = vld [vmem:[%s44 + $0x1d0] sm:$0xff]
  %v120 = vld [vmem:[%s44 + $0x1d8] sm:$0xff]
  %v121 = vld [vmem:[%s44 + $0x1e0] sm:$0xff]
  %v122 = vld [vmem:[%s44 + $0x1e8] sm:$0xff]
  %v123 = vld [vmem:[%s44 + $0x1f0] sm:$0xff]
  %v124 = vld [vmem:[%s44 + $0x1f8] sm:$0xff]
  %v125 = vld [vmem:[%s52] sm:$0xff]
  %v126 = vld [vmem:[%s52 + $0x8] sm:$0xff]
  %v127 = vld [vmem:[%s52 + $0x10] sm:$0xff]
  %v128 = vld [vmem:[%s52 + $0x18] sm:$0xff]
  %v129 = vld [vmem:[%s52 + $0x20] sm:$0xff]
  %v130 = vld [vmem:[%s52 + $0x28] sm:$0xff]
  %v131 = vld [vmem:[%s52 + $0x30] sm:$0xff]
  %v132 = vld [vmem:[%s52 + $0x38] sm:$0xff]
  %v133 = vld [vmem:[%s52 + $0x40] sm:$0xff]
  %v134 = vld [vmem:[%s52 + $0x48] sm:$0xff]
  %v135 = vld [vmem:[%s52 + $0x50] sm:$0xff]
  %v136 = vld [vmem:[%s52 + $0x58] sm:$0xff]
  %v137 = vld [vmem:[%s52 + $0x60] sm:$0xff]
  %v138 = vld [vmem:[%s52 + $0x68] sm:$0xff]
  %v139 = vld [vmem:[%s52 + $0x70] sm:$0xff]
  %v140 = vld [vmem:[%s52 + $0x78] sm:$0xff]
  %v141 = vld [vmem:[%s52 + $0x80] sm:$0xff]
  %v142 = vld [vmem:[%s52 + $0x88] sm:$0xff]
  %v143 = vld [vmem:[%s52 + $0x90] sm:$0xff]
  %v144 = vld [vmem:[%s52 + $0x98] sm:$0xff]
  %v145 = vld [vmem:[%s52 + $0xa0] sm:$0xff]
  %v146 = vld [vmem:[%s52 + $0xa8] sm:$0xff]
  %v147 = vld [vmem:[%s52 + $0xb0] sm:$0xff]
  %v148 = vld [vmem:[%s52 + $0xb8] sm:$0xff]
  %v149 = vld [vmem:[%s52 + $0xc0] sm:$0xff]
  %v150 = vld [vmem:[%s52 + $0xc8] sm:$0xff]
  %v151 = vld [vmem:[%s52 + $0xd0] sm:$0xff]
  %v152 = vld [vmem:[%s52 + $0xd8] sm:$0xff]
  %v153 = vld [vmem:[%s52 + $0xe0] sm:$0xff]
  %v154 = vld [vmem:[%s52 + $0xe8] sm:$0xff]
  %v155 = vld [vmem:[%s52 + $0xf0] sm:$0xff]
  %v156 = vld [vmem:[%s52 + $0xf8] sm:$0xff]
  %v157 = vld [vmem:[%s52 + $0x100] sm:$0xff]
  %v158 = vld [vmem:[%s52 + $0x108] sm:$0xff]
  %v159 = vld [vmem:[%s52 + $0x110] sm:$0xff]
  %v160 = vld [vmem:[%s52 + $0x118] sm:$0xff]
  %v161 = vld [vmem:[%s52 + $0x120] sm:$0xff]
  %v162 = vld [vmem:[%s52 + $0x128] sm:$0xff]
  %v163 = vld [vmem:[%s52 + $0x130] sm:$0xff]
  %v164 = vld [vmem:[%s52 + $0x138] sm:$0xff]
  %v165 = vld [vmem:[%s52 + $0x140] sm:$0xff]
  %v166 = vld [vmem:[%s52 + $0x148] sm:$0xff]
  %v167 = vld [vmem:[%s52 + $0x150] sm:$0xff]
  %v168 = vld [vmem:[%s52 + $0x158] sm:$0xff]
  %v169 = vld [vmem:[%s52 + $0x160] sm:$0xff]
  %v170 = vld [vmem:[%s52 + $0x168] sm:$0xff]
  %v171 = vld [vmem:[%s52 + $0x170] sm:$0xff]
  %v172 = vld [vmem:[%s52 + $0x178] sm:$0xff]
  %v173 = vld [vmem:[%s52 + $0x180] sm:$0xff]
  %v174 = vld [vmem:[%s52 + $0x188] sm:$0xff]
  %v175 = vld [vmem:[%s52 + $0x190] sm:$0xff]
  %v176 = vld [vmem:[%s52 + $0x198] sm:$0xff]
  %v177 = vld [vmem:[%s52 + $0x1a0] sm:$0xff]
  %v178 = vld [vmem:[%s52 + $0x1a8] sm:$0xff]
  %v179 = vld [vmem:[%s52 + $0x1b0] sm:$0xff]
  %v180 = vld [vmem:[%s52 + $0x1b8] sm:$0xff]
  %v181 = vld [vmem:[%s52 + $0x1c0] sm:$0xff]
  %v182 = vld [vmem:[%s52 + $0x1c8] sm:$0xff]
  %v183 = vld [vmem:[%s52 + $0x1d0] sm:$0xff]
  %v184 = vld [vmem:[%s52 + $0x1d8] sm:$0xff]
  %v185 = vld [vmem:[%s52 + $0x1e0] sm:$0xff]
  %v186 = vld [vmem:[%s52 + $0x1e8] sm:$0xff]
  %v187 = vld [vmem:[%s52 + $0x1f0] sm:$0xff]
  %v188 = vld [vmem:[%s52 + $0x1f8] sm:$0xff]
  %vm189 = vcmask 31744
  %v190 = vsel %vm189, %v61, -inf
  %191 = vmax.xlane.f32.xlu0 %v190
  %v192 = vpop.xlane.xlu0 %191
  %v193 = vsel %vm189, %v62, -inf
  %194 = vmax.xlane.f32.xlu0 %v193
  %v195 = vpop.xlane.xlu0 %194
  %v196 = vsel %vm189, %v63, -inf
  %197 = vmax.xlane.f32.xlu0 %v196
  %v198 = vpop.xlane.xlu0 %197
  %v199 = vsel %vm189, %v64, -inf
  %200 = vmax.xlane.f32.xlu0 %v199
  %v201 = vpop.xlane.xlu0 %200
  %v202 = vsel %vm189, %v65, -inf
  %203 = vmax.xlane.f32.xlu0 %v202
  %v204 = vpop.xlane.xlu0 %203
  %v205 = vsel %vm189, %v66, -inf
  %206 = vmax.xlane.f32.xlu0 %v205
  %v207 = vpop.xlane.xlu0 %206
  %v208 = vsel %vm189, %v67, -inf
  %209 = vmax.xlane.f32.xlu0 %v208
  %v210 = vpop.xlane.xlu0 %209
  %v211 = vsel %vm189, %v68, -inf
  %212 = vmax.xlane.f32.xlu0 %v211
  %v213 = vpop.xlane.xlu0 %212
  %v214 = vsel %vm189, %v69, -inf
  %215 = vmax.xlane.f32.xlu0 %v214
  %v216 = vpop.xlane.xlu0 %215
  %v217 = vsel %vm189, %v70, -inf
  %218 = vmax.xlane.f32.xlu0 %v217
  %v219 = vpop.xlane.xlu0 %218
  %v220 = vsel %vm189, %v71, -inf
  %221 = vmax.xlane.f32.xlu0 %v220
  %v222 = vpop.xlane.xlu0 %221
  %v223 = vsel %vm189, %v72, -inf
  %224 = vmax.xlane.f32.xlu0 %v223
  %v225 = vpop.xlane.xlu0 %224
  %v226 = vsel %vm189, %v73, -inf
  %227 = vmax.xlane.f32.xlu0 %v226
  %v228 = vpop.xlane.xlu0 %227
  %v229 = vsel %vm189, %v74, -inf
  %230 = vmax.xlane.f32.xlu0 %v229
  %v231 = vpop.xlane.xlu0 %230
  %v232 = vsel %vm189, %v75, -inf
  %233 = vmax.xlane.f32.xlu0 %v232
  %v234 = vpop.xlane.xlu0 %233
  %v235 = vsel %vm189, %v76, -inf
  %236 = vmax.xlane.f32.xlu0 %v235
  %v237 = vpop.xlane.xlu0 %236
  %v238 = vsel %vm189, %v77, -inf
  %239 = vmax.xlane.f32.xlu0 %v238
  %v240 = vpop.xlane.xlu0 %239
  %v241 = vsel %vm189, %v78, -inf
  %242 = vmax.xlane.f32.xlu0 %v241
  %v243 = vpop.xlane.xlu0 %242
  %v244 = vsel %vm189, %v79, -inf
  %245 = vmax.xlane.f32.xlu0 %v244
  %v246 = vpop.xlane.xlu0 %245
  %v247 = vsel %vm189, %v80, -inf
  %248 = vmax.xlane.f32.xlu0 %v247
  %v249 = vpop.xlane.xlu0 %248
  %v250 = vsel %vm189, %v81, -inf
  %251 = vmax.xlane.f32.xlu0 %v250
  %v252 = vpop.xlane.xlu0 %251
  %v253 = vsel %vm189, %v82, -inf
  %254 = vmax.xlane.f32.xlu0 %v253
  %v255 = vpop.xlane.xlu0 %254
  %v256 = vsel %vm189, %v83, -inf
  %257 = vmax.xlane.f32.xlu0 %v256
  %v258 = vpop.xlane.xlu0 %257
  %v259 = vsel %vm189, %v84, -inf
  %260 = vmax.xlane.f32.xlu0 %v259
  %v261 = vpop.xlane.xlu0 %260
  %v262 = vsel %vm189, %v85, -inf
  %263 = vmax.xlane.f32.xlu0 %v262
  %v264 = vpop.xlane.xlu0 %263
  %v265 = vsel %vm189, %v86, -inf
  %266 = vmax.xlane.f32.xlu0 %v265
  %v267 = vpop.xlane.xlu0 %266
  %v268 = vsel %vm189, %v87, -inf
  %269 = vmax.xlane.f32.xlu0 %v268
  %v270 = vpop.xlane.xlu0 %269
  %v271 = vsel %vm189, %v88, -inf
  %272 = vmax.xlane.f32.xlu0 %v271
  %v273 = vpop.xlane.xlu0 %272
  %v274 = vsel %vm189, %v89, -inf
  %275 = vmax.xlane.f32.xlu0 %v274
  %v276 = vpop.xlane.xlu0 %275
  %v277 = vsel %vm189, %v90, -inf
  %278 = vmax.xlane.f32.xlu0 %v277
  %v279 = vpop.xlane.xlu0 %278
  %v280 = vsel %vm189, %v91, -inf
  %281 = vmax.xlane.f32.xlu0 %v280
  %v282 = vpop.xlane.xlu0 %281
  %v283 = vsel %vm189, %v92, -inf
  %284 = vmax.xlane.f32.xlu0 %v283
  %v285 = vpop.xlane.xlu0 %284
  %v286 = vsel %vm189, %v93, -inf
  %287 = vmax.xlane.f32.xlu0 %v286
  %v288 = vpop.xlane.xlu0 %287
  %v289 = vsel %vm189, %v94, -inf
  %290 = vmax.xlane.f32.xlu0 %v289
  %v291 = vpop.xlane.xlu0 %290
  %v292 = vsel %vm189, %v95, -inf
  %293 = vmax.xlane.f32.xlu0 %v292
  %v294 = vpop.xlane.xlu0 %293
  %v295 = vsel %vm189, %v96, -inf
  %296 = vmax.xlane.f32.xlu0 %v295
  %v297 = vpop.xlane.xlu0 %296
  %v298 = vsel %vm189, %v97, -inf
  %299 = vmax.xlane.f32.xlu0 %v298
  %v300 = vpop.xlane.xlu0 %299
  %v301 = vsel %vm189, %v98, -inf
  %302 = vmax.xlane.f32.xlu0 %v301
  %v303 = vpop.xlane.xlu0 %302
  %v304 = vsel %vm189, %v99, -inf
  %305 = vmax.xlane.f32.xlu0 %v304
  %v306 = vpop.xlane.xlu0 %305
  %v307 = vsel %vm189, %v100, -inf
  %308 = vmax.xlane.f32.xlu0 %v307
  %v309 = vpop.xlane.xlu0 %308
  %v310 = vsel %vm189, %v101, -inf
  %311 = vmax.xlane.f32.xlu0 %v310
  %v312 = vpop.xlane.xlu0 %311
  %v313 = vsel %vm189, %v102, -inf
  %314 = vmax.xlane.f32.xlu0 %v313
  %v315 = vpop.xlane.xlu0 %314
  %v316 = vsel %vm189, %v103, -inf
  %317 = vmax.xlane.f32.xlu0 %v316
  %v318 = vpop.xlane.xlu0 %317
  %v319 = vsel %vm189, %v104, -inf
  %320 = vmax.xlane.f32.xlu0 %v319
  %v321 = vpop.xlane.xlu0 %320
  %v322 = vsel %vm189, %v105, -inf
  %323 = vmax.xlane.f32.xlu0 %v322
  %v324 = vpop.xlane.xlu0 %323
  %v325 = vsel %vm189, %v106, -inf
  %326 = vmax.xlane.f32.xlu0 %v325
  %v327 = vpop.xlane.xlu0 %326
  %v328 = vsel %vm189, %v107, -inf
  %329 = vmax.xlane.f32.xlu0 %v328
  %v330 = vpop.xlane.xlu0 %329
  %v331 = vsel %vm189, %v108, -inf
  %332 = vmax.xlane.f32.xlu0 %v331
  %v333 = vpop.xlane.xlu0 %332
  %v334 = vsel %vm189, %v109, -inf
  %335 = vmax.xlane.f32.xlu0 %v334
  %v336 = vpop.xlane.xlu0 %335
  %v337 = vsel %vm189, %v110, -inf
  %338 = vmax.xlane.f32.xlu0 %v337
  %v339 = vpop.xlane.xlu0 %338
  %v340 = vsel %vm189, %v111, -inf
  %341 = vmax.xlane.f32.xlu0 %v340
  %v342 = vpop.xlane.xlu0 %341
  %v343 = vsel %vm189, %v112, -inf
  %344 = vmax.xlane.f32.xlu0 %v343
  %v345 = vpop.xlane.xlu0 %344
  %v346 = vsel %vm189, %v113, -inf
  %347 = vmax.xlane.f32.xlu0 %v346
  %v348 = vpop.xlane.xlu0 %347
  %v349 = vsel %vm189, %v114, -inf
  %350 = vmax.xlane.f32.xlu0 %v349
  %v351 = vpop.xlane.xlu0 %350
  %v352 = vsel %vm189, %v115, -inf
  %353 = vmax.xlane.f32.xlu0 %v352
  %v354 = vpop.xlane.xlu0 %353
  %v355 = vsel %vm189, %v116, -inf
  %356 = vmax.xlane.f32.xlu0 %v355
  %v357 = vpop.xlane.xlu0 %356
  %v358 = vsel %vm189, %v117, -inf
  %359 = vmax.xlane.f32.xlu0 %v358
  %v360 = vpop.xlane.xlu0 %359
  %v361 = vsel %vm189, %v118, -inf
  %362 = vmax.xlane.f32.xlu0 %v361
  %v363 = vpop.xlane.xlu0 %362
  %v364 = vsel %vm189, %v119, -inf
  %365 = vmax.xlane.f32.xlu0 %v364
  %v366 = vpop.xlane.xlu0 %365
  %v367 = vsel %vm189, %v120, -inf
  %368 = vmax.xlane.f32.xlu0 %v367
  %v369 = vpop.xlane.xlu0 %368
  %v370 = vsel %vm189, %v121, -inf
  %371 = vmax.xlane.f32.xlu0 %v370
  %v372 = vpop.xlane.xlu0 %371
  %v373 = vsel %vm189, %v122, -inf
  %374 = vmax.xlane.f32.xlu0 %v373
  %v375 = vpop.xlane.xlu0 %374
  %v376 = vsel %vm189, %v123, -inf
  %377 = vmax.xlane.f32.xlu0 %v376
  %v378 = vpop.xlane.xlu0 %377
  %v379 = vsel %vm189, %v124, -inf
  %380 = vmax.xlane.f32.xlu0 %v379
  %v381 = vpop.xlane.xlu0 %380
  %v382 = vsub.f32 %v61, %v192
  %v383 = vsub.f32 %v62, %v195
  %v384 = vsub.f32 %v63, %v198
  %v385 = vsub.f32 %v64, %v201
  %v386 = vsub.f32 %v65, %v204
  %v387 = vsub.f32 %v66, %v207
  %v388 = vsub.f32 %v67, %v210
  %v389 = vsub.f32 %v68, %v213
  %v390 = vsub.f32 %v69, %v216
  %v391 = vsub.f32 %v70, %v219
  %v392 = vsub.f32 %v71, %v222
  %v393 = vsub.f32 %v72, %v225
  %v394 = vsub.f32 %v73, %v228
  %v395 = vsub.f32 %v74, %v231
  %v396 = vsub.f32 %v75, %v234
  %v397 = vsub.f32 %v76, %v237
  %v398 = vsub.f32 %v77, %v240
  %v399 = vsub.f32 %v78, %v243
  %v400 = vsub.f32 %v79, %v246
  %v401 = vsub.f32 %v80, %v249
  %v402 = vsub.f32 %v81, %v252
  %v403 = vsub.f32 %v82, %v255
  %v404 = vsub.f32 %v83, %v258
  %v405 = vsub.f32 %v84, %v261
  %v406 = vsub.f32 %v85, %v264
  %v407 = vsub.f32 %v86, %v267
  %v408 = vsub.f32 %v87, %v270
  %v409 = vsub.f32 %v88, %v273
  %v410 = vsub.f32 %v89, %v276
  %v411 = vsub.f32 %v90, %v279
  %v412 = vsub.f32 %v91, %v282
  %v413 = vsub.f32 %v92, %v285
  %v414 = vsub.f32 %v93, %v288
  %v415 = vsub.f32 %v94, %v291
  %v416 = vsub.f32 %v95, %v294
  %v417 = vsub.f32 %v96, %v297
  %v418 = vsub.f32 %v97, %v300
  %v419 = vsub.f32 %v98, %v303
  %v420 = vsub.f32 %v99, %v306
  %v421 = vsub.f32 %v100, %v309
  %v422 = vsub.f32 %v101, %v312
  %v423 = vsub.f32 %v102, %v315
  %v424 = vsub.f32 %v103, %v318
  %v425 = vsub.f32 %v104, %v321
  %v426 = vsub.f32 %v105, %v324
  %v427 = vsub.f32 %v106, %v327
  %v428 = vsub.f32 %v107, %v330
  %v429 = vsub.f32 %v108, %v333
  %v430 = vsub.f32 %v109, %v336
  %v431 = vsub.f32 %v110, %v339
  %v432 = vsub.f32 %v111, %v342
  %v433 = vsub.f32 %v112, %v345
  %v434 = vsub.f32 %v113, %v348
  %v435 = vsub.f32 %v114, %v351
  %v436 = vsub.f32 %v115, %v354
  %v437 = vsub.f32 %v116, %v357
  %v438 = vsub.f32 %v117, %v360
  %v439 = vsub.f32 %v118, %v363
  %v440 = vsub.f32 %v119, %v366
  %v441 = vsub.f32 %v120, %v369
  %v442 = vsub.f32 %v121, %v372
  %v443 = vsub.f32 %v122, %v375
  %v444 = vsub.f32 %v123, %v378
  %v445 = vsub.f32 %v124, %v381
  %v446 = vmul.f32 %v382, 1.442695
  %v447 = vpow.pop %v446
  %v448 = vmul.f32 %v383, 1.442695
  %v449 = vpow.pop %v448
  %v450 = vmul.f32 %v384, 1.442695
  %v451 = vpow.pop %v450
  %v452 = vmul.f32 %v385, 1.442695
  %v453 = vpow.pop %v452
  %v454 = vmul.f32 %v386, 1.442695
  %v455 = vpow.pop %v454
  %v456 = vmul.f32 %v387, 1.442695
  %v457 = vpow.pop %v456
  %v458 = vmul.f32 %v388, 1.442695
  %v459 = vpow.pop %v458
  %v460 = vmul.f32 %v389, 1.442695
  %v461 = vpow.pop %v460
  %v462 = vmul.f32 %v390, 1.442695
  %v463 = vpow.pop %v462
  %v464 = vmul.f32 %v391, 1.442695
  %v465 = vpow.pop %v464
  %v466 = vmul.f32 %v392, 1.442695
  %v467 = vpow.pop %v466
  %v468 = vmul.f32 %v393, 1.442695
  %v469 = vpow.pop %v468
  %v470 = vmul.f32 %v394, 1.442695
  %v471 = vpow.pop %v470
  %v472 = vmul.f32 %v395, 1.442695
  %v473 = vpow.pop %v472
  %v474 = vmul.f32 %v396, 1.442695
  %v475 = vpow.pop %v474
  %v476 = vmul.f32 %v397, 1.442695
  %v477 = vpow.pop %v476
  %v478 = vmul.f32 %v398, 1.442695
  %v479 = vpow.pop %v478
  %v480 = vmul.f32 %v399, 1.442695
  %v481 = vpow.pop %v480
  %v482 = vmul.f32 %v400, 1.442695
  %v483 = vpow.pop %v482
  %v484 = vmul.f32 %v401, 1.442695
  %v485 = vpow.pop %v484
  %v486 = vmul.f32 %v402, 1.442695
  %v487 = vpow.pop %v486
  %v488 = vmul.f32 %v403, 1.442695
  %v489 = vpow.pop %v488
  %v490 = vmul.f32 %v404, 1.442695
  %v491 = vpow.pop %v490
  %v492 = vmul.f32 %v405, 1.442695
  %v493 = vpow.pop %v492
  %v494 = vmul.f32 %v406, 1.442695
  %v495 = vpow.pop %v494
  %v496 = vmul.f32 %v407, 1.442695
  %v497 = vpow.pop %v496
  %v498 = vmul.f32 %v408, 1.442695
  %v499 = vpow.pop %v498
  %v500 = vmul.f32 %v409, 1.442695
  %v501 = vpow.pop %v500
  %v502 = vmul.f32 %v410, 1.442695
  %v503 = vpow.pop %v502
  %v504 = vmul.f32 %v411, 1.442695
  %v505 = vpow.pop %v504
  %v506 = vmul.f32 %v412, 1.442695
  %v507 = vpow.pop %v506
  %v508 = vmul.f32 %v413, 1.442695
  %v509 = vpow.pop %v508
  %v510 = vmul.f32 %v414, 1.442695
  %v511 = vpow.pop %v510
  %v512 = vmul.f32 %v415, 1.442695
  %v513 = vpow.pop %v512
  %v514 = vmul.f32 %v416, 1.442695
  %v515 = vpow.pop %v514
  %v516 = vmul.f32 %v417, 1.442695
  %v517 = vpow.pop %v516
  %v518 = vmul.f32 %v418, 1.442695
  %v519 = vpow.pop %v518
  %v520 = vmul.f32 %v419, 1.442695
  %v521 = vpow.pop %v520
  %v522 = vmul.f32 %v420, 1.442695
  %v523 = vpow.pop %v522
  %v524 = vmul.f32 %v421, 1.442695
  %v525 = vpow.pop %v524
  %v526 = vmul.f32 %v422, 1.442695
  %v527 = vpow.pop %v526
  %v528 = vmul.f32 %v423, 1.442695
  %v529 = vpow.pop %v528
  %v530 = vmul.f32 %v424, 1.442695
  %v531 = vpow.pop %v530
  %v532 = vmul.f32 %v425, 1.442695
  %v533 = vpow.pop %v532
  %v534 = vmul.f32 %v426, 1.442695
  %v535 = vpow.pop %v534
  %v536 = vmul.f32 %v427, 1.442695
  %v537 = vpow.pop %v536
  %v538 = vmul.f32 %v428, 1.442695
  %v539 = vpow.pop %v538
  %v540 = vmul.f32 %v429, 1.442695
  %v541 = vpow.pop %v540
  %v542 = vmul.f32 %v430, 1.442695
  %v543 = vpow.pop %v542
  %v544 = vmul.f32 %v431, 1.442695
  %v545 = vpow.pop %v544
  %v546 = vmul.f32 %v432, 1.442695
  %v547 = vpow.pop %v546
  %v548 = vmul.f32 %v433, 1.442695
  %v549 = vpow.pop %v548
  %v550 = vmul.f32 %v434, 1.442695
  %v551 = vpow.pop %v550
  %v552 = vmul.f32 %v435, 1.442695
  %v553 = vpow.pop %v552
  %v554 = vmul.f32 %v436, 1.442695
  %v555 = vpow.pop %v554
  %v556 = vmul.f32 %v437, 1.442695
  %v557 = vpow.pop %v556
  %v558 = vmul.f32 %v438, 1.442695
  %v559 = vpow.pop %v558
  %v560 = vmul.f32 %v439, 1.442695
  %v561 = vpow.pop %v560
  %v562 = vmul.f32 %v440, 1.442695
  %v563 = vpow.pop %v562
  %v564 = vmul.f32 %v441, 1.442695
  %v565 = vpow.pop %v564
  %v566 = vmul.f32 %v442, 1.442695
  %v567 = vpow.pop %v566
  %v568 = vmul.f32 %v443, 1.442695
  %v569 = vpow.pop %v568
  %v570 = vmul.f32 %v444, 1.442695
  %v571 = vpow.pop %v570
  %v572 = vmul.f32 %v445, 1.442695
  %v573 = vpow.pop %v572
  %v574 = vsel %vm189, %v447, 0.0
  %575 = vadd.xlane.f32.xlu0 %v574
  %v576 = vpop.xlane.xlu0 %575
  %v577 = vsel %vm189, %v449, 0.0
  %578 = vadd.xlane.f32.xlu0 %v577
  %v579 = vpop.xlane.xlu0 %578
  %v580 = vsel %vm189, %v451, 0.0
  %581 = vadd.xlane.f32.xlu0 %v580
  %v582 = vpop.xlane.xlu0 %581
  %v583 = vsel %vm189, %v453, 0.0
  %584 = vadd.xlane.f32.xlu0 %v583
  %v585 = vpop.xlane.xlu0 %584
  %v586 = vsel %vm189, %v455, 0.0
  %587 = vadd.xlane.f32.xlu0 %v586
  %v588 = vpop.xlane.xlu0 %587
  %v589 = vsel %vm189, %v457, 0.0
  %590 = vadd.xlane.f32.xlu0 %v589
  %v591 = vpop.xlane.xlu0 %590
  %v592 = vsel %vm189, %v459, 0.0
  %593 = vadd.xlane.f32.xlu0 %v592
  %v594 = vpop.xlane.xlu0 %593
  %v595 = vsel %vm189, %v461, 0.0
  %596 = vadd.xlane.f32.xlu0 %v595
  %v597 = vpop.xlane.xlu0 %596
  %v598 = vsel %vm189, %v463, 0.0
  %599 = vadd.xlane.f32.xlu0 %v598
  %v600 = vpop.xlane.xlu0 %599
  %v601 = vsel %vm189, %v465, 0.0
  %602 = vadd.xlane.f32.xlu0 %v601
  %v603 = vpop.xlane.xlu0 %602
  %v604 = vsel %vm189, %v467, 0.0
  %605 = vadd.xlane.f32.xlu0 %v604
  %v606 = vpop.xlane.xlu0 %605
  %v607 = vsel %vm189, %v469, 0.0
  %608 = vadd.xlane.f32.xlu0 %v607
  %v609 = vpop.xlane.xlu0 %608
  %v610 = vsel %vm189, %v471, 0.0
  %611 = vadd.xlane.f32.xlu0 %v610
  %v612 = vpop.xlane.xlu0 %611
  %v613 = vsel %vm189, %v473, 0.0
  %614 = vadd.xlane.f32.xlu0 %v613
  %v615 = vpop.xlane.xlu0 %614
  %v616 = vsel %vm189, %v475, 0.0
  %617 = vadd.xlane.f32.xlu0 %v616
  %v618 = vpop.xlane.xlu0 %617
  %v619 = vsel %vm189, %v477, 0.0
  %620 = vadd.xlane.f32.xlu0 %v619
  %v621 = vpop.xlane.xlu0 %620
  %v622 = vsel %vm189, %v479, 0.0
  %623 = vadd.xlane.f32.xlu0 %v622
  %v624 = vpop.xlane.xlu0 %623
  %v625 = vsel %vm189, %v481, 0.0
  %626 = vadd.xlane.f32.xlu0 %v625
  %v627 = vpop.xlane.xlu0 %626
  %v628 = vsel %vm189, %v483, 0.0
  %629 = vadd.xlane.f32.xlu0 %v628
  %v630 = vpop.xlane.xlu0 %629
  %v631 = vsel %vm189, %v485, 0.0
  %632 = vadd.xlane.f32.xlu0 %v631
  %v633 = vpop.xlane.xlu0 %632
  %v634 = vsel %vm189, %v487, 0.0
  %635 = vadd.xlane.f32.xlu0 %v634
  %v636 = vpop.xlane.xlu0 %635
  %v637 = vsel %vm189, %v489, 0.0
  %638 = vadd.xlane.f32.xlu0 %v637
  %v639 = vpop.xlane.xlu0 %638
  %v640 = vsel %vm189, %v491, 0.0
  %641 = vadd.xlane.f32.xlu0 %v640
  %v642 = vpop.xlane.xlu0 %641
  %v643 = vsel %vm189, %v493, 0.0
  %644 = vadd.xlane.f32.xlu0 %v643
  %v645 = vpop.xlane.xlu0 %644
  %v646 = vsel %vm189, %v495, 0.0
  %647 = vadd.xlane.f32.xlu0 %v646
  %v648 = vpop.xlane.xlu0 %647
  %v649 = vsel %vm189, %v497, 0.0
  %650 = vadd.xlane.f32.xlu0 %v649
  %v651 = vpop.xlane.xlu0 %650
  %v652 = vsel %vm189, %v499, 0.0
  %653 = vadd.xlane.f32.xlu0 %v652
  %v654 = vpop.xlane.xlu0 %653
  %v655 = vsel %vm189, %v501, 0.0
  %656 = vadd.xlane.f32.xlu0 %v655
  %v657 = vpop.xlane.xlu0 %656
  %v658 = vsel %vm189, %v503, 0.0
  %659 = vadd.xlane.f32.xlu0 %v658
  %v660 = vpop.xlane.xlu0 %659
  %v661 = vsel %vm189, %v505, 0.0
  %662 = vadd.xlane.f32.xlu0 %v661
  %v663 = vpop.xlane.xlu0 %662
  %v664 = vsel %vm189, %v507, 0.0
  %665 = vadd.xlane.f32.xlu0 %v664
  %v666 = vpop.xlane.xlu0 %665
  %v667 = vsel %vm189, %v509, 0.0
  %668 = vadd.xlane.f32.xlu0 %v667
  %v669 = vpop.xlane.xlu0 %668
  %v670 = vsel %vm189, %v511, 0.0
  %671 = vadd.xlane.f32.xlu0 %v670
  %v672 = vpop.xlane.xlu0 %671
  %v673 = vsel %vm189, %v513, 0.0
  %674 = vadd.xlane.f32.xlu0 %v673
  %v675 = vpop.xlane.xlu0 %674
  %v676 = vsel %vm189, %v515, 0.0
  %677 = vadd.xlane.f32.xlu0 %v676
  %v678 = vpop.xlane.xlu0 %677
  %v679 = vsel %vm189, %v517, 0.0
  %680 = vadd.xlane.f32.xlu0 %v679
  %v681 = vpop.xlane.xlu0 %680
  %v682 = vsel %vm189, %v519, 0.0
  %683 = vadd.xlane.f32.xlu0 %v682
  %v684 = vpop.xlane.xlu0 %683
  %v685 = vsel %vm189, %v521, 0.0
  %686 = vadd.xlane.f32.xlu0 %v685
  %v687 = vpop.xlane.xlu0 %686
  %v688 = vsel %vm189, %v523, 0.0
  %689 = vadd.xlane.f32.xlu0 %v688
  %v690 = vpop.xlane.xlu0 %689
  %v691 = vsel %vm189, %v525, 0.0
  %692 = vadd.xlane.f32.xlu0 %v691
  %v693 = vpop.xlane.xlu0 %692
  %v694 = vsel %vm189, %v527, 0.0
  %695 = vadd.xlane.f32.xlu0 %v694
  %v696 = vpop.xlane.xlu0 %695
  %v697 = vsel %vm189, %v529, 0.0
  %698 = vadd.xlane.f32.xlu0 %v697
  %v699 = vpop.xlane.xlu0 %698
  %v700 = vsel %vm189, %v531, 0.0
  %701 = vadd.xlane.f32.xlu0 %v700
  %v702 = vpop.xlane.xlu0 %701
  %v703 = vsel %vm189, %v533, 0.0
  %704 = vadd.xlane.f32.xlu0 %v703
  %v705 = vpop.xlane.xlu0 %704
  %v706 = vsel %vm189, %v535, 0.0
  %707 = vadd.xlane.f32.xlu0 %v706
  %v708 = vpop.xlane.xlu0 %707
  %v709 = vsel %vm189, %v537, 0.0
  %710 = vadd.xlane.f32.xlu0 %v709
  %v711 = vpop.xlane.xlu0 %710
  %v712 = vsel %vm189, %v539, 0.0
  %713 = vadd.xlane.f32.xlu0 %v712
  %v714 = vpop.xlane.xlu0 %713
  %v715 = vsel %vm189, %v541, 0.0
  %716 = vadd.xlane.f32.xlu0 %v715
  %v717 = vpop.xlane.xlu0 %716
  %v718 = vsel %vm189, %v543, 0.0
  %719 = vadd.xlane.f32.xlu0 %v718
  %v720 = vpop.xlane.xlu0 %719
  %v721 = vsel %vm189, %v545, 0.0
  %722 = vadd.xlane.f32.xlu0 %v721
  %v723 = vpop.xlane.xlu0 %722
  %v724 = vsel %vm189, %v547, 0.0
  %725 = vadd.xlane.f32.xlu0 %v724
  %v726 = vpop.xlane.xlu0 %725
  %v727 = vsel %vm189, %v549, 0.0
  %728 = vadd.xlane.f32.xlu0 %v727
  %v729 = vpop.xlane.xlu0 %728
  %v730 = vsel %vm189, %v551, 0.0
  %731 = vadd.xlane.f32.xlu0 %v730
  %v732 = vpop.xlane.xlu0 %731
  %v733 = vsel %vm189, %v553, 0.0
  %734 = vadd.xlane.f32.xlu0 %v733
  %v735 = vpop.xlane.xlu0 %734
  %v736 = vsel %vm189, %v555, 0.0
  %737 = vadd.xlane.f32.xlu0 %v736
  %v738 = vpop.xlane.xlu0 %737
  %v739 = vsel %vm189, %v557, 0.0
  %740 = vadd.xlane.f32.xlu0 %v739
  %v741 = vpop.xlane.xlu0 %740
  %v742 = vsel %vm189, %v559, 0.0
  %743 = vadd.xlane.f32.xlu0 %v742
  %v744 = vpop.xlane.xlu0 %743
  %v745 = vsel %vm189, %v561, 0.0
  %746 = vadd.xlane.f32.xlu0 %v745
  %v747 = vpop.xlane.xlu0 %746
  %v748 = vsel %vm189, %v563, 0.0
  %749 = vadd.xlane.f32.xlu0 %v748
  %v750 = vpop.xlane.xlu0 %749
  %v751 = vsel %vm189, %v565, 0.0
  %752 = vadd.xlane.f32.xlu0 %v751
  %v753 = vpop.xlane.xlu0 %752
  %v754 = vsel %vm189, %v567, 0.0
  %755 = vadd.xlane.f32.xlu0 %v754
  %v756 = vpop.xlane.xlu0 %755
  %v757 = vsel %vm189, %v569, 0.0
  %758 = vadd.xlane.f32.xlu0 %v757
  %v759 = vpop.xlane.xlu0 %758
  %v760 = vsel %vm189, %v571, 0.0
  %761 = vadd.xlane.f32.xlu0 %v760
  %v762 = vpop.xlane.xlu0 %761
  %v763 = vsel %vm189, %v573, 0.0
  %764 = vadd.xlane.f32.xlu0 %v763
  %v765 = vpop.xlane.xlu0 %764
  %v766 = vlog2.pop %v576
  %v767 = vmul.f32 %v766, 0.6931472
  %v768 = vlog2.pop %v579
  %v769 = vmul.f32 %v768, 0.6931472
  %v770 = vlog2.pop %v582
  %v771 = vmul.f32 %v770, 0.6931472
  %v772 = vlog2.pop %v585
  %v773 = vmul.f32 %v772, 0.6931472
  %v774 = vlog2.pop %v588
  %v775 = vmul.f32 %v774, 0.6931472
  %v776 = vlog2.pop %v591
  %v777 = vmul.f32 %v776, 0.6931472
  %v778 = vlog2.pop %v594
  %v779 = vmul.f32 %v778, 0.6931472
  %v780 = vlog2.pop %v597
  %v781 = vmul.f32 %v780, 0.6931472
  %v782 = vlog2.pop %v600
  %v783 = vmul.f32 %v782, 0.6931472
  %v784 = vlog2.pop %v603
  %v785 = vmul.f32 %v784, 0.6931472
  %v786 = vlog2.pop %v606
  %v787 = vmul.f32 %v786, 0.6931472
  %v788 = vlog2.pop %v609
  %v789 = vmul.f32 %v788, 0.6931472
  %v790 = vlog2.pop %v612
  %v791 = vmul.f32 %v790, 0.6931472
  %v792 = vlog2.pop %v615
  %v793 = vmul.f32 %v792, 0.6931472
  %v794 = vlog2.pop %v618
  %v795 = vmul.f32 %v794, 0.6931472
  %v796 = vlog2.pop %v621
  %v797 = vmul.f32 %v796, 0.6931472
  %v798 = vlog2.pop %v624
  %v799 = vmul.f32 %v798, 0.6931472
  %v800 = vlog2.pop %v627
  %v801 = vmul.f32 %v800, 0.6931472
  %v802 = vlog2.pop %v630
  %v803 = vmul.f32 %v802, 0.6931472
  %v804 = vlog2.pop %v633
  %v805 = vmul.f32 %v804, 0.6931472
  %v806 = vlog2.pop %v636
  %v807 = vmul.f32 %v806, 0.6931472
  %v808 = vlog2.pop %v639
  %v809 = vmul.f32 %v808, 0.6931472
  %v810 = vlog2.pop %v642
  %v811 = vmul.f32 %v810, 0.6931472
  %v812 = vlog2.pop %v645
  %v813 = vmul.f32 %v812, 0.6931472
  %v814 = vlog2.pop %v648
  %v815 = vmul.f32 %v814, 0.6931472
  %v816 = vlog2.pop %v651
  %v817 = vmul.f32 %v816, 0.6931472
  %v818 = vlog2.pop %v654
  %v819 = vmul.f32 %v818, 0.6931472
  %v820 = vlog2.pop %v657
  %v821 = vmul.f32 %v820, 0.6931472
  %v822 = vlog2.pop %v660
  %v823 = vmul.f32 %v822, 0.6931472
  %v824 = vlog2.pop %v663
  %v825 = vmul.f32 %v824, 0.6931472
  %v826 = vlog2.pop %v666
  %v827 = vmul.f32 %v826, 0.6931472
  %v828 = vlog2.pop %v669
  %v829 = vmul.f32 %v828, 0.6931472
  %v830 = vlog2.pop %v672
  %v831 = vmul.f32 %v830, 0.6931472
  %v832 = vlog2.pop %v675
  %v833 = vmul.f32 %v832, 0.6931472
  %v834 = vlog2.pop %v678
  %v835 = vmul.f32 %v834, 0.6931472
  %v836 = vlog2.pop %v681
  %v837 = vmul.f32 %v836, 0.6931472
  %v838 = vlog2.pop %v684
  %v839 = vmul.f32 %v838, 0.6931472
  %v840 = vlog2.pop %v687
  %v841 = vmul.f32 %v840, 0.6931472
  %v842 = vlog2.pop %v690
  %v843 = vmul.f32 %v842, 0.6931472
  %v844 = vlog2.pop %v693
  %v845 = vmul.f32 %v844, 0.6931472
  %v846 = vlog2.pop %v696
  %v847 = vmul.f32 %v846, 0.6931472
  %v848 = vlog2.pop %v699
  %v849 = vmul.f32 %v848, 0.6931472
  %v850 = vlog2.pop %v702
  %v851 = vmul.f32 %v850, 0.6931472
  %v852 = vlog2.pop %v705
  %v853 = vmul.f32 %v852, 0.6931472
  %v854 = vlog2.pop %v708
  %v855 = vmul.f32 %v854, 0.6931472
  %v856 = vlog2.pop %v711
  %v857 = vmul.f32 %v856, 0.6931472
  %v858 = vlog2.pop %v714
  %v859 = vmul.f32 %v858, 0.6931472
  %v860 = vlog2.pop %v717
  %v861 = vmul.f32 %v860, 0.6931472
  %v862 = vlog2.pop %v720
  %v863 = vmul.f32 %v862, 0.6931472
  %v864 = vlog2.pop %v723
  %v865 = vmul.f32 %v864, 0.6931472
  %v866 = vlog2.pop %v726
  %v867 = vmul.f32 %v866, 0.6931472
  %v868 = vlog2.pop %v729
  %v869 = vmul.f32 %v868, 0.6931472
  %v870 = vlog2.pop %v732
  %v871 = vmul.f32 %v870, 0.6931472
  %v872 = vlog2.pop %v735
  %v873 = vmul.f32 %v872, 0.6931472
  %v874 = vlog2.pop %v738
  %v875 = vmul.f32 %v874, 0.6931472
  %v876 = vlog2.pop %v741
  %v877 = vmul.f32 %v876, 0.6931472
  %v878 = vlog2.pop %v744
  %v879 = vmul.f32 %v878, 0.6931472
  %v880 = vlog2.pop %v747
  %v881 = vmul.f32 %v880, 0.6931472
  %v882 = vlog2.pop %v750
  %v883 = vmul.f32 %v882, 0.6931472
  %v884 = vlog2.pop %v753
  %v885 = vmul.f32 %v884, 0.6931472
  %v886 = vlog2.pop %v756
  %v887 = vmul.f32 %v886, 0.6931472
  %v888 = vlog2.pop %v759
  %v889 = vmul.f32 %v888, 0.6931472
  %v890 = vlog2.pop %v762
  %v891 = vmul.f32 %v890, 0.6931472
  %v892 = vlog2.pop %v765
  %v893 = vmul.f32 %v892, 0.6931472
  %v894 = vlaneseq
  %v895 = vand.u32 %v894, 127
  %896 = vset.pattern.permute.xlu0 0
  %897 = vperm.xlu0 %896, %v125
  %v898 = vpop.permute.xlu0 %897
  %899 = vset.pattern.permute.xlu0 0
  %900 = vperm.xlu0 %899, %v126
  %v901 = vpop.permute.xlu0 %900
  %902 = vset.pattern.permute.xlu0 0
  %903 = vperm.xlu0 %902, %v127
  %v904 = vpop.permute.xlu0 %903
  %905 = vset.pattern.permute.xlu0 0
  %906 = vperm.xlu0 %905, %v128
  %v907 = vpop.permute.xlu0 %906
  %908 = vset.pattern.permute.xlu0 0
  %909 = vperm.xlu0 %908, %v129
  %v910 = vpop.permute.xlu0 %909
  %911 = vset.pattern.permute.xlu0 0
  %912 = vperm.xlu0 %911, %v130
  %v913 = vpop.permute.xlu0 %912
  %914 = vset.pattern.permute.xlu0 0
  %915 = vperm.xlu0 %914, %v131
  %v916 = vpop.permute.xlu0 %915
  %917 = vset.pattern.permute.xlu0 0
  %918 = vperm.xlu0 %917, %v132
  %v919 = vpop.permute.xlu0 %918
  %920 = vset.pattern.permute.xlu0 0
  %921 = vperm.xlu0 %920, %v133
  %v922 = vpop.permute.xlu0 %921
  %923 = vset.pattern.permute.xlu0 0
  %924 = vperm.xlu0 %923, %v134
  %v925 = vpop.permute.xlu0 %924
  %926 = vset.pattern.permute.xlu0 0
  %927 = vperm.xlu0 %926, %v135
  %v928 = vpop.permute.xlu0 %927
  %929 = vset.pattern.permute.xlu0 0
  %930 = vperm.xlu0 %929, %v136
  %v931 = vpop.permute.xlu0 %930
  %932 = vset.pattern.permute.xlu0 0
  %933 = vperm.xlu0 %932, %v137
  %v934 = vpop.permute.xlu0 %933
  %935 = vset.pattern.permute.xlu0 0
  %936 = vperm.xlu0 %935, %v138
  %v937 = vpop.permute.xlu0 %936
  %938 = vset.pattern.permute.xlu0 0
  %939 = vperm.xlu0 %938, %v139
  %v940 = vpop.permute.xlu0 %939
  %941 = vset.pattern.permute.xlu0 0
  %942 = vperm.xlu0 %941, %v140
  %v943 = vpop.permute.xlu0 %942
  %944 = vset.pattern.permute.xlu0 0
  %945 = vperm.xlu0 %944, %v141
  %v946 = vpop.permute.xlu0 %945
  %947 = vset.pattern.permute.xlu0 0
  %948 = vperm.xlu0 %947, %v142
  %v949 = vpop.permute.xlu0 %948
  %950 = vset.pattern.permute.xlu0 0
  %951 = vperm.xlu0 %950, %v143
  %v952 = vpop.permute.xlu0 %951
  %953 = vset.pattern.permute.xlu0 0
  %954 = vperm.xlu0 %953, %v144
  %v955 = vpop.permute.xlu0 %954
  %956 = vset.pattern.permute.xlu0 0
  %957 = vperm.xlu0 %956, %v145
  %v958 = vpop.permute.xlu0 %957
  %959 = vset.pattern.permute.xlu0 0
  %960 = vperm.xlu0 %959, %v146
  %v961 = vpop.permute.xlu0 %960
  %962 = vset.pattern.permute.xlu0 0
  %963 = vperm.xlu0 %962, %v147
  %v964 = vpop.permute.xlu0 %963
  %965 = vset.pattern.permute.xlu0 0
  %966 = vperm.xlu0 %965, %v148
  %v967 = vpop.permute.xlu0 %966
  %968 = vset.pattern.permute.xlu0 0
  %969 = vperm.xlu0 %968, %v149
  %v970 = vpop.permute.xlu0 %969
  %971 = vset.pattern.permute.xlu0 0
  %972 = vperm.xlu0 %971, %v150
  %v973 = vpop.permute.xlu0 %972
  %974 = vset.pattern.permute.xlu0 0
  %975 = vperm.xlu0 %974, %v151
  %v976 = vpop.permute.xlu0 %975
  %977 = vset.pattern.permute.xlu0 0
  %978 = vperm.xlu0 %977, %v152
  %v979 = vpop.permute.xlu0 %978
  %980 = vset.pattern.permute.xlu0 0
  %981 = vperm.xlu0 %980, %v153
  %v982 = vpop.permute.xlu0 %981
  %983 = vset.pattern.permute.xlu0 0
  %984 = vperm.xlu0 %983, %v154
  %v985 = vpop.permute.xlu0 %984
  %986 = vset.pattern.permute.xlu0 0
  %987 = vperm.xlu0 %986, %v155
  %v988 = vpop.permute.xlu0 %987
  %989 = vset.pattern.permute.xlu0 0
  %990 = vperm.xlu0 %989, %v156
  %v991 = vpop.permute.xlu0 %990
  %992 = vset.pattern.permute.xlu0 0
  %993 = vperm.xlu0 %992, %v157
  %v994 = vpop.permute.xlu0 %993
  %995 = vset.pattern.permute.xlu0 0
  %996 = vperm.xlu0 %995, %v158
  %v997 = vpop.permute.xlu0 %996
  %998 = vset.pattern.permute.xlu0 0
  %999 = vperm.xlu0 %998, %v159
  %v1000 = vpop.permute.xlu0 %999
  %1001 = vset.pattern.permute.xlu0 0
  %1002 = vperm.xlu0 %1001, %v160
  %v1003 = vpop.permute.xlu0 %1002
  %1004 = vset.pattern.permute.xlu0 0
  %1005 = vperm.xlu0 %1004, %v161
  %v1006 = vpop.permute.xlu0 %1005
  %1007 = vset.pattern.permute.xlu0 0
  %1008 = vperm.xlu0 %1007, %v162
  %v1009 = vpop.permute.xlu0 %1008
  %1010 = vset.pattern.permute.xlu0 0
  %1011 = vperm.xlu0 %1010, %v163
  %v1012 = vpop.permute.xlu0 %1011
  %1013 = vset.pattern.permute.xlu0 0
  %1014 = vperm.xlu0 %1013, %v164
  %v1015 = vpop.permute.xlu0 %1014
  %1016 = vset.pattern.permute.xlu0 0
  %1017 = vperm.xlu0 %1016, %v165
  %v1018 = vpop.permute.xlu0 %1017
  %1019 = vset.pattern.permute.xlu0 0
  %1020 = vperm.xlu0 %1019, %v166
  %v1021 = vpop.permute.xlu0 %1020
  %1022 = vset.pattern.permute.xlu0 0
  %1023 = vperm.xlu0 %1022, %v167
  %v1024 = vpop.permute.xlu0 %1023
  %1025 = vset.pattern.permute.xlu0 0
  %1026 = vperm.xlu0 %1025, %v168
  %v1027 = vpop.permute.xlu0 %1026
  %1028 = vset.pattern.permute.xlu0 0
  %1029 = vperm.xlu0 %1028, %v169
  %v1030 = vpop.permute.xlu0 %1029
  %1031 = vset.pattern.permute.xlu0 0
  %1032 = vperm.xlu0 %1031, %v170
  %v1033 = vpop.permute.xlu0 %1032
  %1034 = vset.pattern.permute.xlu0 0
  %1035 = vperm.xlu0 %1034, %v171
  %v1036 = vpop.permute.xlu0 %1035
  %1037 = vset.pattern.permute.xlu0 0
  %1038 = vperm.xlu0 %1037, %v172
  %v1039 = vpop.permute.xlu0 %1038
  %1040 = vset.pattern.permute.xlu0 0
  %1041 = vperm.xlu0 %1040, %v173
  %v1042 = vpop.permute.xlu0 %1041
  %1043 = vset.pattern.permute.xlu0 0
  %1044 = vperm.xlu0 %1043, %v174
  %v1045 = vpop.permute.xlu0 %1044
  %1046 = vset.pattern.permute.xlu0 0
  %1047 = vperm.xlu0 %1046, %v175
  %v1048 = vpop.permute.xlu0 %1047
  %1049 = vset.pattern.permute.xlu0 0
  %1050 = vperm.xlu0 %1049, %v176
  %v1051 = vpop.permute.xlu0 %1050
  %1052 = vset.pattern.permute.xlu0 0
  %1053 = vperm.xlu0 %1052, %v177
  %v1054 = vpop.permute.xlu0 %1053
  %1055 = vset.pattern.permute.xlu0 0
  %1056 = vperm.xlu0 %1055, %v178
  %v1057 = vpop.permute.xlu0 %1056
  %1058 = vset.pattern.permute.xlu0 0
  %1059 = vperm.xlu0 %1058, %v179
  %v1060 = vpop.permute.xlu0 %1059
  %1061 = vset.pattern.permute.xlu0 0
  %1062 = vperm.xlu0 %1061, %v180
  %v1063 = vpop.permute.xlu0 %1062
  %1064 = vset.pattern.permute.xlu0 0
  %1065 = vperm.xlu0 %1064, %v181
  %v1066 = vpop.permute.xlu0 %1065
  %1067 = vset.pattern.permute.xlu0 0
  %1068 = vperm.xlu0 %1067, %v182
  %v1069 = vpop.permute.xlu0 %1068
  %1070 = vset.pattern.permute.xlu0 0
  %1071 = vperm.xlu0 %1070, %v183
  %v1072 = vpop.permute.xlu0 %1071
  %1073 = vset.pattern.permute.xlu0 0
  %1074 = vperm.xlu0 %1073, %v184
  %v1075 = vpop.permute.xlu0 %1074
  %1076 = vset.pattern.permute.xlu0 0
  %1077 = vperm.xlu0 %1076, %v185
  %v1078 = vpop.permute.xlu0 %1077
  %1079 = vset.pattern.permute.xlu0 0
  %1080 = vperm.xlu0 %1079, %v186
  %v1081 = vpop.permute.xlu0 %1080
  %1082 = vset.pattern.permute.xlu0 0
  %1083 = vperm.xlu0 %1082, %v187
  %v1084 = vpop.permute.xlu0 %1083
  %1085 = vset.pattern.permute.xlu0 0
  %1086 = vperm.xlu0 %1085, %v188
  %v1087 = vpop.permute.xlu0 %1086
  %vm1088 = vcmp.eq.s32.totalorder %v895, %v898
  %vm1089 = vcmp.eq.s32.totalorder %v895, %v901
  %vm1090 = vcmp.eq.s32.totalorder %v895, %v904
  %vm1091 = vcmp.eq.s32.totalorder %v895, %v907
  %vm1092 = vcmp.eq.s32.totalorder %v895, %v910
  %vm1093 = vcmp.eq.s32.totalorder %v895, %v913
  %vm1094 = vcmp.eq.s32.totalorder %v895, %v916
  %vm1095 = vcmp.eq.s32.totalorder %v895, %v919
  %vm1096 = vcmp.eq.s32.totalorder %v895, %v922
  %vm1097 = vcmp.eq.s32.totalorder %v895, %v925
  %vm1098 = vcmp.eq.s32.totalorder %v895, %v928
  %vm1099 = vcmp.eq.s32.totalorder %v895, %v931
  %vm1100 = vcmp.eq.s32.totalorder %v895, %v934
  %vm1101 = vcmp.eq.s32.totalorder %v895, %v937
  %vm1102 = vcmp.eq.s32.totalorder %v895, %v940
  %vm1103 = vcmp.eq.s32.totalorder %v895, %v943
  %vm1104 = vcmp.eq.s32.totalorder %v895, %v946
  %vm1105 = vcmp.eq.s32.totalorder %v895, %v949
  %vm1106 = vcmp.eq.s32.totalorder %v895, %v952
  %vm1107 = vcmp.eq.s32.totalorder %v895, %v955
  %vm1108 = vcmp.eq.s32.totalorder %v895, %v958
  %vm1109 = vcmp.eq.s32.totalorder %v895, %v961
  %vm1110 = vcmp.eq.s32.totalorder %v895, %v964
  %vm1111 = vcmp.eq.s32.totalorder %v895, %v967
  %vm1112 = vcmp.eq.s32.totalorder %v895, %v970
  %vm1113 = vcmp.eq.s32.totalorder %v895, %v973
  %vm1114 = vcmp.eq.s32.totalorder %v895, %v976
  %vm1115 = vcmp.eq.s32.totalorder %v895, %v979
  %vm1116 = vcmp.eq.s32.totalorder %v895, %v982
  %vm1117 = vcmp.eq.s32.totalorder %v895, %v985
  %vm1118 = vcmp.eq.s32.totalorder %v895, %v988
  %vm1119 = vcmp.eq.s32.totalorder %v895, %v991
  %vm1120 = vcmp.eq.s32.totalorder %v895, %v994
  %vm1121 = vcmp.eq.s32.totalorder %v895, %v997
  %vm1122 = vcmp.eq.s32.totalorder %v895, %v1000
  %vm1123 = vcmp.eq.s32.totalorder %v895, %v1003
  %vm1124 = vcmp.eq.s32.totalorder %v895, %v1006
  %vm1125 = vcmp.eq.s32.totalorder %v895, %v1009
  %vm1126 = vcmp.eq.s32.totalorder %v895, %v1012
  %vm1127 = vcmp.eq.s32.totalorder %v895, %v1015
  %vm1128 = vcmp.eq.s32.totalorder %v895, %v1018
  %vm1129 = vcmp.eq.s32.totalorder %v895, %v1021
  %vm1130 = vcmp.eq.s32.totalorder %v895, %v1024
  %vm1131 = vcmp.eq.s32.totalorder %v895, %v1027
  %vm1132 = vcmp.eq.s32.totalorder %v895, %v1030
  %vm1133 = vcmp.eq.s32.totalorder %v895, %v1033
  %vm1134 = vcmp.eq.s32.totalorder %v895, %v1036
  %vm1135 = vcmp.eq.s32.totalorder %v895, %v1039
  %vm1136 = vcmp.eq.s32.totalorder %v895, %v1042
  %vm1137 = vcmp.eq.s32.totalorder %v895, %v1045
  %vm1138 = vcmp.eq.s32.totalorder %v895, %v1048
  %vm1139 = vcmp.eq.s32.totalorder %v895, %v1051
  %vm1140 = vcmp.eq.s32.totalorder %v895, %v1054
  %vm1141 = vcmp.eq.s32.totalorder %v895, %v1057
  %vm1142 = vcmp.eq.s32.totalorder %v895, %v1060
  %vm1143 = vcmp.eq.s32.totalorder %v895, %v1063
  %vm1144 = vcmp.eq.s32.totalorder %v895, %v1066
  %vm1145 = vcmp.eq.s32.totalorder %v895, %v1069
  %vm1146 = vcmp.eq.s32.totalorder %v895, %v1072
  %vm1147 = vcmp.eq.s32.totalorder %v895, %v1075
  %vm1148 = vcmp.eq.s32.totalorder %v895, %v1078
  %vm1149 = vcmp.eq.s32.totalorder %v895, %v1081
  %vm1150 = vcmp.eq.s32.totalorder %v895, %v1084
  %vm1151 = vcmp.eq.s32.totalorder %v895, %v1087
  %v1152 = vsel %vm1088, %v382, 0.0
  %v1153 = vsel %vm1089, %v383, 0.0
  %v1154 = vsel %vm1090, %v384, 0.0
  %v1155 = vsel %vm1091, %v385, 0.0
  %v1156 = vsel %vm1092, %v386, 0.0
  %v1157 = vsel %vm1093, %v387, 0.0
  %v1158 = vsel %vm1094, %v388, 0.0
  %v1159 = vsel %vm1095, %v389, 0.0
  %v1160 = vsel %vm1096, %v390, 0.0
  %v1161 = vsel %vm1097, %v391, 0.0
  %v1162 = vsel %vm1098, %v392, 0.0
  %v1163 = vsel %vm1099, %v393, 0.0
  %v1164 = vsel %vm1100, %v394, 0.0
  %v1165 = vsel %vm1101, %v395, 0.0
  %v1166 = vsel %vm1102, %v396, 0.0
  %v1167 = vsel %vm1103, %v397, 0.0
  %v1168 = vsel %vm1104, %v398, 0.0
  %v1169 = vsel %vm1105, %v399, 0.0
  %v1170 = vsel %vm1106, %v400, 0.0
  %v1171 = vsel %vm1107, %v401, 0.0
  %v1172 = vsel %vm1108, %v402, 0.0
  %v1173 = vsel %vm1109, %v403, 0.0
  %v1174 = vsel %vm1110, %v404, 0.0
  %v1175 = vsel %vm1111, %v405, 0.0
  %v1176 = vsel %vm1112, %v406, 0.0
  %v1177 = vsel %vm1113, %v407, 0.0
  %v1178 = vsel %vm1114, %v408, 0.0
  %v1179 = vsel %vm1115, %v409, 0.0
  %v1180 = vsel %vm1116, %v410, 0.0
  %v1181 = vsel %vm1117, %v411, 0.0
  %v1182 = vsel %vm1118, %v412, 0.0
  %v1183 = vsel %vm1119, %v413, 0.0
  %v1184 = vsel %vm1120, %v414, 0.0
  %v1185 = vsel %vm1121, %v415, 0.0
  %v1186 = vsel %vm1122, %v416, 0.0
  %v1187 = vsel %vm1123, %v417, 0.0
  %v1188 = vsel %vm1124, %v418, 0.0
  %v1189 = vsel %vm1125, %v419, 0.0
  %v1190 = vsel %vm1126, %v420, 0.0
  %v1191 = vsel %vm1127, %v421, 0.0
  %v1192 = vsel %vm1128, %v422, 0.0
  %v1193 = vsel %vm1129, %v423, 0.0
  %v1194 = vsel %vm1130, %v424, 0.0
  %v1195 = vsel %vm1131, %v425, 0.0
  %v1196 = vsel %vm1132, %v426, 0.0
  %v1197 = vsel %vm1133, %v427, 0.0
  %v1198 = vsel %vm1134, %v428, 0.0
  %v1199 = vsel %vm1135, %v429, 0.0
  %v1200 = vsel %vm1136, %v430, 0.0
  %v1201 = vsel %vm1137, %v431, 0.0
  %v1202 = vsel %vm1138, %v432, 0.0
  %v1203 = vsel %vm1139, %v433, 0.0
  %v1204 = vsel %vm1140, %v434, 0.0
  %v1205 = vsel %vm1141, %v435, 0.0
  %v1206 = vsel %vm1142, %v436, 0.0
  %v1207 = vsel %vm1143, %v437, 0.0
  %v1208 = vsel %vm1144, %v438, 0.0
  %v1209 = vsel %vm1145, %v439, 0.0
  %v1210 = vsel %vm1146, %v440, 0.0
  %v1211 = vsel %vm1147, %v441, 0.0
  %v1212 = vsel %vm1148, %v442, 0.0
  %v1213 = vsel %vm1149, %v443, 0.0
  %v1214 = vsel %vm1150, %v444, 0.0
  %v1215 = vsel %vm1151, %v445, 0.0
  %v1216 = vsel %vm189, %v1152, 0.0
  %1217 = vadd.xlane.f32.xlu0 %v1216
  %v1218 = vpop.xlane.xlu0 %1217
  %v1219 = vsel %vm189, %v1153, 0.0
  %1220 = vadd.xlane.f32.xlu0 %v1219
  %v1221 = vpop.xlane.xlu0 %1220
  %v1222 = vsel %vm189, %v1154, 0.0
  %1223 = vadd.xlane.f32.xlu0 %v1222
  %v1224 = vpop.xlane.xlu0 %1223
  %v1225 = vsel %vm189, %v1155, 0.0
  %1226 = vadd.xlane.f32.xlu0 %v1225
  %v1227 = vpop.xlane.xlu0 %1226
  %v1228 = vsel %vm189, %v1156, 0.0
  %1229 = vadd.xlane.f32.xlu0 %v1228
  %v1230 = vpop.xlane.xlu0 %1229
  %v1231 = vsel %vm189, %v1157, 0.0
  %1232 = vadd.xlane.f32.xlu0 %v1231
  %v1233 = vpop.xlane.xlu0 %1232
  %v1234 = vsel %vm189, %v1158, 0.0
  %1235 = vadd.xlane.f32.xlu0 %v1234
  %v1236 = vpop.xlane.xlu0 %1235
  %v1237 = vsel %vm189, %v1159, 0.0
  %1238 = vadd.xlane.f32.xlu0 %v1237
  %v1239 = vpop.xlane.xlu0 %1238
  %v1240 = vsel %vm189, %v1160, 0.0
  %1241 = vadd.xlane.f32.xlu0 %v1240
  %v1242 = vpop.xlane.xlu0 %1241
  %v1243 = vsel %vm189, %v1161, 0.0
  %1244 = vadd.xlane.f32.xlu0 %v1243
  %v1245 = vpop.xlane.xlu0 %1244
  %v1246 = vsel %vm189, %v1162, 0.0
  %1247 = vadd.xlane.f32.xlu0 %v1246
  %v1248 = vpop.xlane.xlu0 %1247
  %v1249 = vsel %vm189, %v1163, 0.0
  %1250 = vadd.xlane.f32.xlu0 %v1249
  %v1251 = vpop.xlane.xlu0 %1250
  %v1252 = vsel %vm189, %v1164, 0.0
  %1253 = vadd.xlane.f32.xlu0 %v1252
  %v1254 = vpop.xlane.xlu0 %1253
  %v1255 = vsel %vm189, %v1165, 0.0
  %1256 = vadd.xlane.f32.xlu0 %v1255
  %v1257 = vpop.xlane.xlu0 %1256
  %v1258 = vsel %vm189, %v1166, 0.0
  %1259 = vadd.xlane.f32.xlu0 %v1258
  %v1260 = vpop.xlane.xlu0 %1259
  %v1261 = vsel %vm189, %v1167, 0.0
  %1262 = vadd.xlane.f32.xlu0 %v1261
  %v1263 = vpop.xlane.xlu0 %1262
  %v1264 = vsel %vm189, %v1168, 0.0
  %1265 = vadd.xlane.f32.xlu0 %v1264
  %v1266 = vpop.xlane.xlu0 %1265
  %v1267 = vsel %vm189, %v1169, 0.0
  %1268 = vadd.xlane.f32.xlu0 %v1267
  %v1269 = vpop.xlane.xlu0 %1268
  %v1270 = vsel %vm189, %v1170, 0.0
  %1271 = vadd.xlane.f32.xlu0 %v1270
  %v1272 = vpop.xlane.xlu0 %1271
  %v1273 = vsel %vm189, %v1171, 0.0
  %1274 = vadd.xlane.f32.xlu0 %v1273
  %v1275 = vpop.xlane.xlu0 %1274
  %v1276 = vsel %vm189, %v1172, 0.0
  %1277 = vadd.xlane.f32.xlu0 %v1276
  %v1278 = vpop.xlane.xlu0 %1277
  %v1279 = vsel %vm189, %v1173, 0.0
  %1280 = vadd.xlane.f32.xlu0 %v1279
  %v1281 = vpop.xlane.xlu0 %1280
  %v1282 = vsel %vm189, %v1174, 0.0
  %1283 = vadd.xlane.f32.xlu0 %v1282
  %v1284 = vpop.xlane.xlu0 %1283
  %v1285 = vsel %vm189, %v1175, 0.0
  %1286 = vadd.xlane.f32.xlu0 %v1285
  %v1287 = vpop.xlane.xlu0 %1286
  %v1288 = vsel %vm189, %v1176, 0.0
  %1289 = vadd.xlane.f32.xlu0 %v1288
  %v1290 = vpop.xlane.xlu0 %1289
  %v1291 = vsel %vm189, %v1177, 0.0
  %1292 = vadd.xlane.f32.xlu0 %v1291
  %v1293 = vpop.xlane.xlu0 %1292
  %v1294 = vsel %vm189, %v1178, 0.0
  %1295 = vadd.xlane.f32.xlu0 %v1294
  %v1296 = vpop.xlane.xlu0 %1295
  %v1297 = vsel %vm189, %v1179, 0.0
  %1298 = vadd.xlane.f32.xlu0 %v1297
  %v1299 = vpop.xlane.xlu0 %1298
  %v1300 = vsel %vm189, %v1180, 0.0
  %1301 = vadd.xlane.f32.xlu0 %v1300
  %v1302 = vpop.xlane.xlu0 %1301
  %v1303 = vsel %vm189, %v1181, 0.0
  %1304 = vadd.xlane.f32.xlu0 %v1303
  %v1305 = vpop.xlane.xlu0 %1304
  %v1306 = vsel %vm189, %v1182, 0.0
  %1307 = vadd.xlane.f32.xlu0 %v1306
  %v1308 = vpop.xlane.xlu0 %1307
  %v1309 = vsel %vm189, %v1183, 0.0
  %1310 = vadd.xlane.f32.xlu0 %v1309
  %v1311 = vpop.xlane.xlu0 %1310
  %v1312 = vsel %vm189, %v1184, 0.0
  %1313 = vadd.xlane.f32.xlu0 %v1312
  %v1314 = vpop.xlane.xlu0 %1313
  %v1315 = vsel %vm189, %v1185, 0.0
  %1316 = vadd.xlane.f32.xlu0 %v1315
  %v1317 = vpop.xlane.xlu0 %1316
  %v1318 = vsel %vm189, %v1186, 0.0
  %1319 = vadd.xlane.f32.xlu0 %v1318
  %v1320 = vpop.xlane.xlu0 %1319
  %v1321 = vsel %vm189, %v1187, 0.0
  %1322 = vadd.xlane.f32.xlu0 %v1321
  %v1323 = vpop.xlane.xlu0 %1322
  %v1324 = vsel %vm189, %v1188, 0.0
  %1325 = vadd.xlane.f32.xlu0 %v1324
  %v1326 = vpop.xlane.xlu0 %1325
  %v1327 = vsel %vm189, %v1189, 0.0
  %1328 = vadd.xlane.f32.xlu0 %v1327
  %v1329 = vpop.xlane.xlu0 %1328
  %v1330 = vsel %vm189, %v1190, 0.0
  %1331 = vadd.xlane.f32.xlu0 %v1330
  %v1332 = vpop.xlane.xlu0 %1331
  %v1333 = vsel %vm189, %v1191, 0.0
  %1334 = vadd.xlane.f32.xlu0 %v1333
  %v1335 = vpop.xlane.xlu0 %1334
  %v1336 = vsel %vm189, %v1192, 0.0
  %1337 = vadd.xlane.f32.xlu0 %v1336
  %v1338 = vpop.xlane.xlu0 %1337
  %v1339 = vsel %vm189, %v1193, 0.0
  %1340 = vadd.xlane.f32.xlu0 %v1339
  %v1341 = vpop.xlane.xlu0 %1340
  %v1342 = vsel %vm189, %v1194, 0.0
  %1343 = vadd.xlane.f32.xlu0 %v1342
  %v1344 = vpop.xlane.xlu0 %1343
  %v1345 = vsel %vm189, %v1195, 0.0
  %1346 = vadd.xlane.f32.xlu0 %v1345
  %v1347 = vpop.xlane.xlu0 %1346
  %v1348 = vsel %vm189, %v1196, 0.0
  %1349 = vadd.xlane.f32.xlu0 %v1348
  %v1350 = vpop.xlane.xlu0 %1349
  %v1351 = vsel %vm189, %v1197, 0.0
  %1352 = vadd.xlane.f32.xlu0 %v1351
  %v1353 = vpop.xlane.xlu0 %1352
  %v1354 = vsel %vm189, %v1198, 0.0
  %1355 = vadd.xlane.f32.xlu0 %v1354
  %v1356 = vpop.xlane.xlu0 %1355
  %v1357 = vsel %vm189, %v1199, 0.0
  %1358 = vadd.xlane.f32.xlu0 %v1357
  %v1359 = vpop.xlane.xlu0 %1358
  %v1360 = vsel %vm189, %v1200, 0.0
  %1361 = vadd.xlane.f32.xlu0 %v1360
  %v1362 = vpop.xlane.xlu0 %1361
  %v1363 = vsel %vm189, %v1201, 0.0
  %1364 = vadd.xlane.f32.xlu0 %v1363
  %v1365 = vpop.xlane.xlu0 %1364
  %v1366 = vsel %vm189, %v1202, 0.0
  %1367 = vadd.xlane.f32.xlu0 %v1366
  %v1368 = vpop.xlane.xlu0 %1367
  %v1369 = vsel %vm189, %v1203, 0.0
  %1370 = vadd.xlane.f32.xlu0 %v1369
  %v1371 = vpop.xlane.xlu0 %1370
  %v1372 = vsel %vm189, %v1204, 0.0
  %1373 = vadd.xlane.f32.xlu0 %v1372
  %v1374 = vpop.xlane.xlu0 %1373
  %v1375 = vsel %vm189, %v1205, 0.0
  %1376 = vadd.xlane.f32.xlu0 %v1375
  %v1377 = vpop.xlane.xlu0 %1376
  %v1378 = vsel %vm189, %v1206, 0.0
  %1379 = vadd.xlane.f32.xlu0 %v1378
  %v1380 = vpop.xlane.xlu0 %1379
  %v1381 = vsel %vm189, %v1207, 0.0
  %1382 = vadd.xlane.f32.xlu0 %v1381
  %v1383 = vpop.xlane.xlu0 %1382
  %v1384 = vsel %vm189, %v1208, 0.0
  %1385 = vadd.xlane.f32.xlu0 %v1384
  %v1386 = vpop.xlane.xlu0 %1385
  %v1387 = vsel %vm189, %v1209, 0.0
  %1388 = vadd.xlane.f32.xlu0 %v1387
  %v1389 = vpop.xlane.xlu0 %1388
  %v1390 = vsel %vm189, %v1210, 0.0
  %1391 = vadd.xlane.f32.xlu0 %v1390
  %v1392 = vpop.xlane.xlu0 %1391
  %v1393 = vsel %vm189, %v1211, 0.0
  %1394 = vadd.xlane.f32.xlu0 %v1393
  %v1395 = vpop.xlane.xlu0 %1394
  %v1396 = vsel %vm189, %v1212, 0.0
  %1397 = vadd.xlane.f32.xlu0 %v1396
  %v1398 = vpop.xlane.xlu0 %1397
  %v1399 = vsel %vm189, %v1213, 0.0
  %1400 = vadd.xlane.f32.xlu0 %v1399
  %v1401 = vpop.xlane.xlu0 %1400
  %v1402 = vsel %vm189, %v1214, 0.0
  %1403 = vadd.xlane.f32.xlu0 %v1402
  %v1404 = vpop.xlane.xlu0 %1403
  %v1405 = vsel %vm189, %v1215, 0.0
  %1406 = vadd.xlane.f32.xlu0 %v1405
  %v1407 = vpop.xlane.xlu0 %1406
  %v1408 = vsub.f32 %v767, %v1218
  %v1409 = vsub.f32 %v769, %v1221
  %v1410 = vsub.f32 %v771, %v1224
  %v1411 = vsub.f32 %v773, %v1227
  %v1412 = vsub.f32 %v775, %v1230
  %v1413 = vsub.f32 %v777, %v1233
  %v1414 = vsub.f32 %v779, %v1236
  %v1415 = vsub.f32 %v781, %v1239
  %v1416 = vsub.f32 %v783, %v1242
  %v1417 = vsub.f32 %v785, %v1245
  %v1418 = vsub.f32 %v787, %v1248
  %v1419 = vsub.f32 %v789, %v1251
  %v1420 = vsub.f32 %v791, %v1254
  %v1421 = vsub.f32 %v793, %v1257
  %v1422 = vsub.f32 %v795, %v1260
  %v1423 = vsub.f32 %v797, %v1263
  %v1424 = vsub.f32 %v799, %v1266
  %v1425 = vsub.f32 %v801, %v1269
  %v1426 = vsub.f32 %v803, %v1272
  %v1427 = vsub.f32 %v805, %v1275
  %v1428 = vsub.f32 %v807, %v1278
  %v1429 = vsub.f32 %v809, %v1281
  %v1430 = vsub.f32 %v811, %v1284
  %v1431 = vsub.f32 %v813, %v1287
  %v1432 = vsub.f32 %v815, %v1290
  %v1433 = vsub.f32 %v817, %v1293
  %v1434 = vsub.f32 %v819, %v1296
  %v1435 = vsub.f32 %v821, %v1299
  %v1436 = vsub.f32 %v823, %v1302
  %v1437 = vsub.f32 %v825, %v1305
  %v1438 = vsub.f32 %v827, %v1308
  %v1439 = vsub.f32 %v829, %v1311
  %v1440 = vsub.f32 %v831, %v1314
  %v1441 = vsub.f32 %v833, %v1317
  %v1442 = vsub.f32 %v835, %v1320
  %v1443 = vsub.f32 %v837, %v1323
  %v1444 = vsub.f32 %v839, %v1326
  %v1445 = vsub.f32 %v841, %v1329
  %v1446 = vsub.f32 %v843, %v1332
  %v1447 = vsub.f32 %v845, %v1335
  %v1448 = vsub.f32 %v847, %v1338
  %v1449 = vsub.f32 %v849, %v1341
  %v1450 = vsub.f32 %v851, %v1344
  %v1451 = vsub.f32 %v853, %v1347
  %v1452 = vsub.f32 %v855, %v1350
  %v1453 = vsub.f32 %v857, %v1353
  %v1454 = vsub.f32 %v859, %v1356
  %v1455 = vsub.f32 %v861, %v1359
  %v1456 = vsub.f32 %v863, %v1362
  %v1457 = vsub.f32 %v865, %v1365
  %v1458 = vsub.f32 %v867, %v1368
  %v1459 = vsub.f32 %v869, %v1371
  %v1460 = vsub.f32 %v871, %v1374
  %v1461 = vsub.f32 %v873, %v1377
  %v1462 = vsub.f32 %v875, %v1380
  %v1463 = vsub.f32 %v877, %v1383
  %v1464 = vsub.f32 %v879, %v1386
  %v1465 = vsub.f32 %v881, %v1389
  %v1466 = vsub.f32 %v883, %v1392
  %v1467 = vsub.f32 %v885, %v1395
  %v1468 = vsub.f32 %v887, %v1398
  %v1469 = vsub.f32 %v889, %v1401
  %v1470 = vsub.f32 %v891, %v1404
  %v1471 = vsub.f32 %v893, %v1407
  %s1472 = sadd.s32 0, 0
  %v1473 = vlaneseq
  %v1474 = vshrl.u32 %v1473, 7
  %v1475 = vadd.s32 %v1474, 8
  %v1476 = vadd.s32 %v1474, 16
  %v1477 = vadd.s32 %v1474, 24
  %v1478 = vadd.s32 %v1474, 32
  %v1479 = vadd.s32 %v1474, 40
  %v1480 = vadd.s32 %v1474, 48
  %v1481 = vadd.s32 %v1474, 56
  %v1482 = vadd.s32 %v1474, 64
  %v1483 = vadd.s32 %v1474, 72
  %v1484 = vadd.s32 %v1474, 80
  %v1485 = vadd.s32 %v1474, 88
  %v1486 = vadd.s32 %v1474, 96
  %v1487 = vadd.s32 %v1474, 104
  %v1488 = vadd.s32 %v1474, 112
  %v1489 = vadd.s32 %v1474, 120
  %v1490 = vadd.s32 %v1474, 128
  %v1491 = vadd.s32 %v1474, 136
  %v1492 = vadd.s32 %v1474, 144
  %v1493 = vadd.s32 %v1474, 152
  %v1494 = vadd.s32 %v1474, 160
  %v1495 = vadd.s32 %v1474, 168
  %v1496 = vadd.s32 %v1474, 176
  %v1497 = vadd.s32 %v1474, 184
  %v1498 = vadd.s32 %v1474, 192
  %v1499 = vadd.s32 %v1474, 200
  %v1500 = vadd.s32 %v1474, 208
  %v1501 = vadd.s32 %v1474, 216
  %v1502 = vadd.s32 %v1474, 224
  %v1503 = vadd.s32 %v1474, 232
  %v1504 = vadd.s32 %v1474, 240
  %v1505 = vadd.s32 %v1474, 248
  %v1506 = vadd.s32 %v1474, 256
  %v1507 = vadd.s32 %v1474, 264
  %v1508 = vadd.s32 %v1474, 272
  %v1509 = vadd.s32 %v1474, 280
  %v1510 = vadd.s32 %v1474, 288
  %v1511 = vadd.s32 %v1474, 296
  %v1512 = vadd.s32 %v1474, 304
  %v1513 = vadd.s32 %v1474, 312
  %v1514 = vadd.s32 %v1474, 320
  %v1515 = vadd.s32 %v1474, 328
  %v1516 = vadd.s32 %v1474, 336
  %v1517 = vadd.s32 %v1474, 344
  %v1518 = vadd.s32 %v1474, 352
  %v1519 = vadd.s32 %v1474, 360
  %v1520 = vadd.s32 %v1474, 368
  %v1521 = vadd.s32 %v1474, 376
  %v1522 = vadd.s32 %v1474, 384
  %v1523 = vadd.s32 %v1474, 392
  %v1524 = vadd.s32 %v1474, 400
  %v1525 = vadd.s32 %v1474, 408
  %v1526 = vadd.s32 %v1474, 416
  %v1527 = vadd.s32 %v1474, 424
  %v1528 = vadd.s32 %v1474, 432
  %v1529 = vadd.s32 %v1474, 440
  %v1530 = vadd.s32 %v1474, 448
  %v1531 = vadd.s32 %v1474, 456
  %v1532 = vadd.s32 %v1474, 464
  %v1533 = vadd.s32 %v1474, 472
  %v1534 = vadd.s32 %v1474, 480
  %v1535 = vadd.s32 %v1474, 488
  %v1536 = vadd.s32 %v1474, 496
  %v1537 = vadd.s32 %v1474, 504
  %s1538 = smul.u32 %s1472, 512
  %v1539 = vstv %s1538
  %v1540 = vadd.s32 %v1474, %v1539
  %v1541 = vadd.s32 %v1475, %v1539
  %v1542 = vadd.s32 %v1476, %v1539
  %v1543 = vadd.s32 %v1477, %v1539
  %v1544 = vadd.s32 %v1478, %v1539
  %v1545 = vadd.s32 %v1479, %v1539
  %v1546 = vadd.s32 %v1480, %v1539
  %v1547 = vadd.s32 %v1481, %v1539
  %v1548 = vadd.s32 %v1482, %v1539
  %v1549 = vadd.s32 %v1483, %v1539
  %v1550 = vadd.s32 %v1484, %v1539
  %v1551 = vadd.s32 %v1485, %v1539
  %v1552 = vadd.s32 %v1486, %v1539
  %v1553 = vadd.s32 %v1487, %v1539
  %v1554 = vadd.s32 %v1488, %v1539
  %v1555 = vadd.s32 %v1489, %v1539
  %v1556 = vadd.s32 %v1490, %v1539
  %v1557 = vadd.s32 %v1491, %v1539
  %v1558 = vadd.s32 %v1492, %v1539
  %v1559 = vadd.s32 %v1493, %v1539
  %v1560 = vadd.s32 %v1494, %v1539
  %v1561 = vadd.s32 %v1495, %v1539
  %v1562 = vadd.s32 %v1496, %v1539
  %v1563 = vadd.s32 %v1497, %v1539
  %v1564 = vadd.s32 %v1498, %v1539
  %v1565 = vadd.s32 %v1499, %v1539
  %v1566 = vadd.s32 %v1500, %v1539
  %v1567 = vadd.s32 %v1501, %v1539
  %v1568 = vadd.s32 %v1502, %v1539
  %v1569 = vadd.s32 %v1503, %v1539
  %v1570 = vadd.s32 %v1504, %v1539
  %v1571 = vadd.s32 %v1505, %v1539
  %v1572 = vadd.s32 %v1506, %v1539
  %v1573 = vadd.s32 %v1507, %v1539
  %v1574 = vadd.s32 %v1508, %v1539
  %v1575 = vadd.s32 %v1509, %v1539
  %v1576 = vadd.s32 %v1510, %v1539
  %v1577 = vadd.s32 %v1511, %v1539
  %v1578 = vadd.s32 %v1512, %v1539
  %v1579 = vadd.s32 %v1513, %v1539
  %v1580 = vadd.s32 %v1514, %v1539
  %v1581 = vadd.s32 %v1515, %v1539
  %v1582 = vadd.s32 %v1516, %v1539
  %v1583 = vadd.s32 %v1517, %v1539
  %v1584 = vadd.s32 %v1518, %v1539
  %v1585 = vadd.s32 %v1519, %v1539
  %v1586 = vadd.s32 %v1520, %v1539
  %v1587 = vadd.s32 %v1521, %v1539
  %v1588 = vadd.s32 %v1522, %v1539
  %v1589 = vadd.s32 %v1523, %v1539
  %v1590 = vadd.s32 %v1524, %v1539
  %v1591 = vadd.s32 %v1525, %v1539
  %v1592 = vadd.s32 %v1526, %v1539
  %v1593 = vadd.s32 %v1527, %v1539
  %v1594 = vadd.s32 %v1528, %v1539
  %v1595 = vadd.s32 %v1529, %v1539
  %v1596 = vadd.s32 %v1530, %v1539
  %v1597 = vadd.s32 %v1531, %v1539
  %v1598 = vadd.s32 %v1532, %v1539
  %v1599 = vadd.s32 %v1533, %v1539
  %v1600 = vadd.s32 %v1534, %v1539
  %v1601 = vadd.s32 %v1535, %v1539
  %v1602 = vadd.s32 %v1536, %v1539
  %v1603 = vadd.s32 %v1537, %v1539
  %vm1604 = vcmp.lt.s32.totalorder %v1540, 512
  %vm1605 = vcmp.lt.s32.totalorder %v1541, 512
  %vm1606 = vcmp.lt.s32.totalorder %v1542, 512
  %vm1607 = vcmp.lt.s32.totalorder %v1543, 512
  %vm1608 = vcmp.lt.s32.totalorder %v1544, 512
  %vm1609 = vcmp.lt.s32.totalorder %v1545, 512
  %vm1610 = vcmp.lt.s32.totalorder %v1546, 512
  %vm1611 = vcmp.lt.s32.totalorder %v1547, 512
  %vm1612 = vcmp.lt.s32.totalorder %v1548, 512
  %vm1613 = vcmp.lt.s32.totalorder %v1549, 512
  %vm1614 = vcmp.lt.s32.totalorder %v1550, 512
  %vm1615 = vcmp.lt.s32.totalorder %v1551, 512
  %vm1616 = vcmp.lt.s32.totalorder %v1552, 512
  %vm1617 = vcmp.lt.s32.totalorder %v1553, 512
  %vm1618 = vcmp.lt.s32.totalorder %v1554, 512
  %vm1619 = vcmp.lt.s32.totalorder %v1555, 512
  %vm1620 = vcmp.lt.s32.totalorder %v1556, 512
  %vm1621 = vcmp.lt.s32.totalorder %v1557, 512
  %vm1622 = vcmp.lt.s32.totalorder %v1558, 512
  %vm1623 = vcmp.lt.s32.totalorder %v1559, 512
  %vm1624 = vcmp.lt.s32.totalorder %v1560, 512
  %vm1625 = vcmp.lt.s32.totalorder %v1561, 512
  %vm1626 = vcmp.lt.s32.totalorder %v1562, 512
  %vm1627 = vcmp.lt.s32.totalorder %v1563, 512
  %vm1628 = vcmp.lt.s32.totalorder %v1564, 512
  %vm1629 = vcmp.lt.s32.totalorder %v1565, 512
  %vm1630 = vcmp.lt.s32.totalorder %v1566, 512
  %vm1631 = vcmp.lt.s32.totalorder %v1567, 512
  %vm1632 = vcmp.lt.s32.totalorder %v1568, 512
  %vm1633 = vcmp.lt.s32.totalorder %v1569, 512
  %vm1634 = vcmp.lt.s32.totalorder %v1570, 512
  %vm1635 = vcmp.lt.s32.totalorder %v1571, 512
  %vm1636 = vcmp.lt.s32.totalorder %v1572, 512
  %vm1637 = vcmp.lt.s32.totalorder %v1573, 512
  %vm1638 = vcmp.lt.s32.totalorder %v1574, 512
  %vm1639 = vcmp.lt.s32.totalorder %v1575, 512
  %vm1640 = vcmp.lt.s32.totalorder %v1576, 512
  %vm1641 = vcmp.lt.s32.totalorder %v1577, 512
  %vm1642 = vcmp.lt.s32.totalorder %v1578, 512
  %vm1643 = vcmp.lt.s32.totalorder %v1579, 512
  %vm1644 = vcmp.lt.s32.totalorder %v1580, 512
  %vm1645 = vcmp.lt.s32.totalorder %v1581, 512
  %vm1646 = vcmp.lt.s32.totalorder %v1582, 512
  %vm1647 = vcmp.lt.s32.totalorder %v1583, 512
  %vm1648 = vcmp.lt.s32.totalorder %v1584, 512
  %vm1649 = vcmp.lt.s32.totalorder %v1585, 512
  %vm1650 = vcmp.lt.s32.totalorder %v1586, 512
  %vm1651 = vcmp.lt.s32.totalorder %v1587, 512
  %vm1652 = vcmp.lt.s32.totalorder %v1588, 512
  %vm1653 = vcmp.lt.s32.totalorder %v1589, 512
  %vm1654 = vcmp.lt.s32.totalorder %v1590, 512
  %vm1655 = vcmp.lt.s32.totalorder %v1591, 512
  %vm1656 = vcmp.lt.s32.totalorder %v1592, 512
  %vm1657 = vcmp.lt.s32.totalorder %v1593, 512
  %vm1658 = vcmp.lt.s32.totalorder %v1594, 512
  %vm1659 = vcmp.lt.s32.totalorder %v1595, 512
  %vm1660 = vcmp.lt.s32.totalorder %v1596, 512
  %vm1661 = vcmp.lt.s32.totalorder %v1597, 512
  %vm1662 = vcmp.lt.s32.totalorder %v1598, 512
  %vm1663 = vcmp.lt.s32.totalorder %v1599, 512
  %vm1664 = vcmp.lt.s32.totalorder %v1600, 512
  %vm1665 = vcmp.lt.s32.totalorder %v1601, 512
  %vm1666 = vcmp.lt.s32.totalorder %v1602, 512
  %vm1667 = vcmp.lt.s32.totalorder %v1603, 512
  %v1668 = vsel %vm1604, %v1408, 0.0
  %v1669 = vsel %vm1605, %v1409, 0.0
  %v1670 = vsel %vm1606, %v1410, 0.0
  %v1671 = vsel %vm1607, %v1411, 0.0
  %v1672 = vsel %vm1608, %v1412, 0.0
  %v1673 = vsel %vm1609, %v1413, 0.0
  %v1674 = vsel %vm1610, %v1414, 0.0
  %v1675 = vsel %vm1611, %v1415, 0.0
  %v1676 = vsel %vm1612, %v1416, 0.0
  %v1677 = vsel %vm1613, %v1417, 0.0
  %v1678 = vsel %vm1614, %v1418, 0.0
  %v1679 = vsel %vm1615, %v1419, 0.0
  %v1680 = vsel %vm1616, %v1420, 0.0
  %v1681 = vsel %vm1617, %v1421, 0.0
  %v1682 = vsel %vm1618, %v1422, 0.0
  %v1683 = vsel %vm1619, %v1423, 0.0
  %v1684 = vsel %vm1620, %v1424, 0.0
  %v1685 = vsel %vm1621, %v1425, 0.0
  %v1686 = vsel %vm1622, %v1426, 0.0
  %v1687 = vsel %vm1623, %v1427, 0.0
  %v1688 = vsel %vm1624, %v1428, 0.0
  %v1689 = vsel %vm1625, %v1429, 0.0
  %v1690 = vsel %vm1626, %v1430, 0.0
  %v1691 = vsel %vm1627, %v1431, 0.0
  %v1692 = vsel %vm1628, %v1432, 0.0
  %v1693 = vsel %vm1629, %v1433, 0.0
  %v1694 = vsel %vm1630, %v1434, 0.0
  %v1695 = vsel %vm1631, %v1435, 0.0
  %v1696 = vsel %vm1632, %v1436, 0.0
  %v1697 = vsel %vm1633, %v1437, 0.0
  %v1698 = vsel %vm1634, %v1438, 0.0
  %v1699 = vsel %vm1635, %v1439, 0.0
  %v1700 = vsel %vm1636, %v1440, 0.0
  %v1701 = vsel %vm1637, %v1441, 0.0
  %v1702 = vsel %vm1638, %v1442, 0.0
  %v1703 = vsel %vm1639, %v1443, 0.0
  %v1704 = vsel %vm1640, %v1444, 0.0
  %v1705 = vsel %vm1641, %v1445, 0.0
  %v1706 = vsel %vm1642, %v1446, 0.0
  %v1707 = vsel %vm1643, %v1447, 0.0
  %v1708 = vsel %vm1644, %v1448, 0.0
  %v1709 = vsel %vm1645, %v1449, 0.0
  %v1710 = vsel %vm1646, %v1450, 0.0
  %v1711 = vsel %vm1647, %v1451, 0.0
  %v1712 = vsel %vm1648, %v1452, 0.0
  %v1713 = vsel %vm1649, %v1453, 0.0
  %v1714 = vsel %vm1650, %v1454, 0.0
  %v1715 = vsel %vm1651, %v1455, 0.0
  %v1716 = vsel %vm1652, %v1456, 0.0
  %v1717 = vsel %vm1653, %v1457, 0.0
  %v1718 = vsel %vm1654, %v1458, 0.0
  %v1719 = vsel %vm1655, %v1459, 0.0
  %v1720 = vsel %vm1656, %v1460, 0.0
  %v1721 = vsel %vm1657, %v1461, 0.0
  %v1722 = vsel %vm1658, %v1462, 0.0
  %v1723 = vsel %vm1659, %v1463, 0.0
  %v1724 = vsel %vm1660, %v1464, 0.0
  %v1725 = vsel %vm1661, %v1465, 0.0
  %v1726 = vsel %vm1662, %v1466, 0.0
  %v1727 = vsel %vm1663, %v1467, 0.0
  %v1728 = vsel %vm1664, %v1468, 0.0
  %v1729 = vsel %vm1665, %v1469, 0.0
  %v1730 = vsel %vm1666, %v1470, 0.0
  %v1731 = vsel %vm1667, %v1471, 0.0
  %vm1732 = vcmask 7168
  %v1733 = vsel %vm1732, %v1668, 0.0
  %v1734 = vsel %vm1732, %v1669, 0.0
  %v1735 = vadd.f32 %v1733, %v1734
  %v1736 = vsel %vm1732, %v1670, 0.0
  %v1737 = vadd.f32 %v1735, %v1736
  %v1738 = vsel %vm1732, %v1671, 0.0
  %v1739 = vadd.f32 %v1737, %v1738
  %v1740 = vsel %vm1732, %v1672, 0.0
  %v1741 = vadd.f32 %v1739, %v1740
  %v1742 = vsel %vm1732, %v1673, 0.0
  %v1743 = vadd.f32 %v1741, %v1742
  %v1744 = vsel %vm1732, %v1674, 0.0
  %v1745 = vadd.f32 %v1743, %v1744
  %v1746 = vsel %vm1732, %v1675, 0.0
  %v1747 = vadd.f32 %v1745, %v1746
  %v1748 = vsel %vm1732, %v1676, 0.0
  %v1749 = vadd.f32 %v1747, %v1748
  %v1750 = vsel %vm1732, %v1677, 0.0
  %v1751 = vadd.f32 %v1749, %v1750
  %v1752 = vsel %vm1732, %v1678, 0.0
  %v1753 = vadd.f32 %v1751, %v1752
  %v1754 = vsel %vm1732, %v1679, 0.0
  %v1755 = vadd.f32 %v1753, %v1754
  %v1756 = vsel %vm1732, %v1680, 0.0
  %v1757 = vadd.f32 %v1755, %v1756
  %v1758 = vsel %vm1732, %v1681, 0.0
  %v1759 = vadd.f32 %v1757, %v1758
  %v1760 = vsel %vm1732, %v1682, 0.0
  %v1761 = vadd.f32 %v1759, %v1760
  %v1762 = vsel %vm1732, %v1683, 0.0
  %v1763 = vadd.f32 %v1761, %v1762
  %v1764 = vsel %vm1732, %v1684, 0.0
  %v1765 = vadd.f32 %v1763, %v1764
  %v1766 = vsel %vm1732, %v1685, 0.0
  %v1767 = vadd.f32 %v1765, %v1766
  %v1768 = vsel %vm1732, %v1686, 0.0
  %v1769 = vadd.f32 %v1767, %v1768
  %v1770 = vsel %vm1732, %v1687, 0.0
  %v1771 = vadd.f32 %v1769, %v1770
  %v1772 = vsel %vm1732, %v1688, 0.0
  %v1773 = vadd.f32 %v1771, %v1772
  %v1774 = vsel %vm1732, %v1689, 0.0
  %v1775 = vadd.f32 %v1773, %v1774
  %v1776 = vsel %vm1732, %v1690, 0.0
  %v1777 = vadd.f32 %v1775, %v1776
  %v1778 = vsel %vm1732, %v1691, 0.0
  %v1779 = vadd.f32 %v1777, %v1778
  %v1780 = vsel %vm1732, %v1692, 0.0
  %v1781 = vadd.f32 %v1779, %v1780
  %v1782 = vsel %vm1732, %v1693, 0.0
  %v1783 = vadd.f32 %v1781, %v1782
  %v1784 = vsel %vm1732, %v1694, 0.0
  %v1785 = vadd.f32 %v1783, %v1784
  %v1786 = vsel %vm1732, %v1695, 0.0
  %v1787 = vadd.f32 %v1785, %v1786
  %v1788 = vsel %vm1732, %v1696, 0.0
  %v1789 = vadd.f32 %v1787, %v1788
  %v1790 = vsel %vm1732, %v1697, 0.0
  %v1791 = vadd.f32 %v1789, %v1790
  %v1792 = vsel %vm1732, %v1698, 0.0
  %v1793 = vadd.f32 %v1791, %v1792
  %v1794 = vsel %vm1732, %v1699, 0.0
  %v1795 = vadd.f32 %v1793, %v1794
  %v1796 = vsel %vm1732, %v1700, 0.0
  %v1797 = vadd.f32 %v1795, %v1796
  %v1798 = vsel %vm1732, %v1701, 0.0
  %v1799 = vadd.f32 %v1797, %v1798
  %v1800 = vsel %vm1732, %v1702, 0.0
  %v1801 = vadd.f32 %v1799, %v1800
  %v1802 = vsel %vm1732, %v1703, 0.0
  %v1803 = vadd.f32 %v1801, %v1802
  %v1804 = vsel %vm1732, %v1704, 0.0
  %v1805 = vadd.f32 %v1803, %v1804
  %v1806 = vsel %vm1732, %v1705, 0.0
  %v1807 = vadd.f32 %v1805, %v1806
  %v1808 = vsel %vm1732, %v1706, 0.0
  %v1809 = vadd.f32 %v1807, %v1808
  %v1810 = vsel %vm1732, %v1707, 0.0
  %v1811 = vadd.f32 %v1809, %v1810
  %v1812 = vsel %vm1732, %v1708, 0.0
  %v1813 = vadd.f32 %v1811, %v1812
  %v1814 = vsel %vm1732, %v1709, 0.0
  %v1815 = vadd.f32 %v1813, %v1814
  %v1816 = vsel %vm1732, %v1710, 0.0
  %v1817 = vadd.f32 %v1815, %v1816
  %v1818 = vsel %vm1732, %v1711, 0.0
  %v1819 = vadd.f32 %v1817, %v1818
  %v1820 = vsel %vm1732, %v1712, 0.0
  %v1821 = vadd.f32 %v1819, %v1820
  %v1822 = vsel %vm1732, %v1713, 0.0
  %v1823 = vadd.f32 %v1821, %v1822
  %v1824 = vsel %vm1732, %v1714, 0.0
  %v1825 = vadd.f32 %v1823, %v1824
  %v1826 = vsel %vm1732, %v1715, 0.0
  %v1827 = vadd.f32 %v1825, %v1826
  %v1828 = vsel %vm1732, %v1716, 0.0
  %v1829 = vadd.f32 %v1827, %v1828
  %v1830 = vsel %vm1732, %v1717, 0.0
  %v1831 = vadd.f32 %v1829, %v1830
  %v1832 = vsel %vm1732, %v1718, 0.0
  %v1833 = vadd.f32 %v1831, %v1832
  %v1834 = vsel %vm1732, %v1719, 0.0
  %v1835 = vadd.f32 %v1833, %v1834
  %v1836 = vsel %vm1732, %v1720, 0.0
  %v1837 = vadd.f32 %v1835, %v1836
  %v1838 = vsel %vm1732, %v1721, 0.0
  %v1839 = vadd.f32 %v1837, %v1838
  %v1840 = vsel %vm1732, %v1722, 0.0
  %v1841 = vadd.f32 %v1839, %v1840
  %v1842 = vsel %vm1732, %v1723, 0.0
  %v1843 = vadd.f32 %v1841, %v1842
  %v1844 = vsel %vm1732, %v1724, 0.0
  %v1845 = vadd.f32 %v1843, %v1844
  %v1846 = vsel %vm1732, %v1725, 0.0
  %v1847 = vadd.f32 %v1845, %v1846
  %v1848 = vsel %vm1732, %v1726, 0.0
  %v1849 = vadd.f32 %v1847, %v1848
  %v1850 = vsel %vm1732, %v1727, 0.0
  %v1851 = vadd.f32 %v1849, %v1850
  %v1852 = vsel %vm1732, %v1728, 0.0
  %v1853 = vadd.f32 %v1851, %v1852
  %v1854 = vsel %vm1732, %v1729, 0.0
  %v1855 = vadd.f32 %v1853, %v1854
  %v1856 = vsel %vm1732, %v1730, 0.0
  %v1857 = vadd.f32 %v1855, %v1856
  %v1858 = vsel %vm1732, %v1731, 0.0
  %v1859 = vadd.f32 %v1857, %v1858
  %1860 = vadd.xlane.f32.xlu0 %v1859
  %v1861 = vpop.xlane.xlu0 %1860
  %v1862 = vrot.slane %v1861, 4
  %v1863 = vadd.f32 %v1861, %v1862
  %v1864 = vrot.slane %v1863, 2
  %v1865 = vadd.f32 %v1863, %v1864
  %v1866 = vrot.slane %v1865, 1
  %v1867 = vadd.f32 %v1865, %v1866
  %s1868 = vtos %v1867
  %v1869 = vld [vmem:[%s2] sm:$0xff]
  %v1870 = vstv %s1868
  %v1871 = vadd.f32 %v1869, %v1870
  %1872 = vst.msk [vmem:[%s2] sm:$0xff] %vm1732, %v1871
  // Predicated region
  $region14: #{tpu_custom_call.1} parent=0 // pred_check
    _
  $region15: #{tpu_custom_call.1} parent=0 // pred_check_branch
    %1874 = sbr.rel (0) target = $region17
  $region16: #{tpu_custom_call.1} parent=0 // pred_region
    _
  $region17: #{tpu_custom_call.1} parent=0 // pred_fallthru
    _
  // Predicated region
  $region18: #{tpu_custom_call.1} parent=0 // pred_check
    _
  $region19: #{tpu_custom_call.1} parent=0 // pred_check_branch
    %1876 = sbr.rel (0) target = $region21
  $region20: #{tpu_custom_call.1} parent=0 // pred_region
    _
  $region21: #{tpu_custom_call.1} parent=0 // pred_fallthru
    _

</llo_original>
